<compile_context>
chip_gen: v7x
topology: tpu7x:2x2x1
jax: 0.10.0
libtpu: 0.0.40
codegen_flags: <defaults>
</compile_context>

<pallas_src>
import functools

import jax
import jax.numpy as jnp
from jax import lax
from jax.experimental import pallas as pl
from jax.experimental.pallas import tpu as pltpu


def _triple(v):
    if isinstance(v, (tuple, list)):
        assert len(v) == 3
        return tuple(int(i) for i in v)
    return (int(v),) * 3


def _pick_vmem_limit():
    """Generation-aware scoped-VMEM limit (~half of physical per-core VMEM)."""
    try:
        cap = int(pltpu.get_tpu_info().vmem_capacity_bytes)
    except Exception:
        cap = 64 << 20                       # conservative: v7x per-core VMEM
    return int(min(48 << 20, max(16 << 20, cap // 2)))


def _pick_tiles(T, cout, cg, hw, st, span, max_m, out_bytes, budget, frame_cap=64):
    """Pick (ct, qt): channel tile (divisor of Cout, multiple of 8, <=256) and
    temporal frame-group tile (divisor of T) whose per-step VMEM residency
    (double-buffered x/w/y blocks + f32 accumulator) fits the budget."""
    kdim = max_m * cg
    ct_cands = [d for d in range(min(cout, 256), 0, -1)
                if cout % d == 0 and d % 8 == 0]
    if not ct_cands:
        ct_cands = [cout]
    qt_cands = [d for d in range(T, 0, -1) if T % d == 0]
    for ct in ct_cands:                      # keep MXU M dim full; shrink qt first
        for qt in qt_cands:
            need = (2 * (qt + span) * cg * hw * 2        # x halo block (bf16, 2 bufs)
                    + 2 * st * ct * kdim * 2             # folded weights (bf16, 2 bufs)
                    + 2 * ct * qt * st * hw * out_bytes  # output block (2 bufs)
                    + ct * hw * 4                        # f32 accumulator
                    + (2 << 20))                         # compiler scratch headroom
            lane_ok = (qt == T) or ((qt * st * hw) % 128 == 0)
            if lane_ok and qt * st <= frame_cap and need <= budget:
                return ct, qt
    # TODO(synk): no divisor-based tile fits the budget; fall back to an un-tiled
    # temporal block (may exceed the scoped VMEM limit on extreme shapes).
    return ct_cands[-1], T


# --------------------------- Pallas kernels ---------------------------------

def _conv_frames(x_ref, w_ref, qt, st, cg, kdim, starts):
    """Yield (to_local, f32 acc of shape (ct, hw)) for every output frame of the block.

    x_ref : (1, 1, (qt+span)*Cg, hw) bf16  -- frame-major rows (frames*Cg merged)
    w_ref : (st, ct, kdim)           bf16  -- per-phase folded weights, kdim = max_m*Cg
    For output frame q*st + p the contributing input frames are the `max_m`
    consecutive rows starting at (q + starts[p])*Cg, so one dot does all taps.
    """
    for ql in range(qt):
        for p in range(st):
            r0 = (ql + starts[p]) * cg
            acc = jnp.dot(w_ref[p], x_ref[0, 0, r0:r0 + kdim, :],
                          preferred_element_type=jnp.float32)
            yield ql * st + p, acc


def _stats_kernel(x_ref, w_ref, sum_ref, sq_ref, *, qt, st, cg, kdim, starts):
    """Per-channel sum / sum-of-squares of the (bias-free) conv over this block."""
    ct = sum_ref.shape[2]
    s_acc = jnp.zeros((ct, 1), jnp.float32)
    q_acc = jnp.zeros((ct, 1), jnp.float32)
    for _, acc in _conv_frames(x_ref, w_ref, qt, st, cg, kdim, starts):
        s_acc = s_acc + jnp.sum(acc, axis=1, keepdims=True)
        q_acc = q_acc + jnp.sum(acc * acc, axis=1, keepdims=True)
    sum_ref[0, 0] = s_acc
    sq_ref[0, 0] = q_acc


def _out_kernel(x_ref, w_ref, scale_ref, shift_ref, y_ref, *,
                qt, st, cg, kdim, starts, hw, relu):
    """Conv + per-channel affine (BN or bias) + optional ReLU, NCDHW-direct store."""
    scale = scale_ref[...]                    # (ct, 1) f32
    shift = shift_ref[...]
    for to, acc in _conv_frames(x_ref, w_ref, qt, st, cg, kdim, starts):
        v = acc * scale + shift
        if relu:
            v = jnp.maximum(v, 0.0)
        y_ref[0, :, to * hw:(to + 1) * hw] = v.astype(y_ref.dtype)


# ------------------------------ pallas_call wrappers -------------------------

def _stats_pass(xs, wfold, *, ct, qt, cg, starts, vmem_limit):
    N, n_qt, rows, hw = xs.shape
    st, cout, kdim = wfold.shape
    n_ct = cout // ct
    kern = functools.partial(_stats_kernel, qt=qt, st=st, cg=cg, kdim=kdim,
                             starts=starts)
    return pl.pallas_call(
        kern,
        out_shape=(jax.ShapeDtypeStruct((N, n_qt, cout, 1), jnp.float32),
                   jax.ShapeDtypeStruct((N, n_qt, cout, 1), jnp.float32)),
        grid=(N, n_ct, n_qt),
        in_specs=[
            pl.BlockSpec((1, 1, rows, hw), lambda n, c, j: (n, j, 0, 0)),
            pl.BlockSpec((st, ct, kdim), lambda n, c, j: (0, c, 0)),
        ],
        out_specs=(
            pl.BlockSpec((1, 1, ct, 1), lambda n, c, j: (n, j, c, 0)),
            pl.BlockSpec((1, 1, ct, 1), lambda n, c, j: (n, j, c, 0)),
        ),
        compiler_params=pltpu.CompilerParams(
            dimension_semantics=("parallel", "parallel", "parallel"),
            vmem_limit_bytes=vmem_limit),
    )(xs, wfold)


def _conv_affine_pass(xs, wfold, scale, shift, *, ct, qt, cg, hw, starts, relu,
                      out_dtype, vmem_limit):
    N, n_qt, rows, _ = xs.shape
    st, cout, kdim = wfold.shape
    n_ct = cout // ct
    frames = qt * st
    kern = functools.partial(_out_kernel, qt=qt, st=st, cg=cg, kdim=kdim,
                             starts=starts, hw=hw, relu=relu)
    return pl.pallas_call(
        kern,
        out_shape=jax.ShapeDtypeStruct((N, cout, n_qt * frames * hw), out_dtype),
        grid=(N, n_ct, n_qt),
        in_specs=[
            pl.BlockSpec((1, 1, rows, hw), lambda n, c, j: (n, j, 0, 0)),
            pl.BlockSpec((st, ct, kdim), lambda n, c, j: (0, c, 0)),
            pl.BlockSpec((ct, 1), lambda n, c, j: (c, 0)),
            pl.BlockSpec((ct, 1), lambda n, c, j: (c, 0)),
        ],
        out_specs=pl.BlockSpec((1, ct, frames * hw), lambda n, c, j: (n, c, j)),
        compiler_params=pltpu.CompilerParams(
            dimension_semantics=("parallel", "parallel", "parallel"),
            vmem_limit_bytes=vmem_limit),
    )(xs, wfold, scale, shift)


# ------------------------------ module ---------------------------------------

class DeConvModule:
    """JAX/Pallas port of pyskl DeConvModule (ConvTranspose3d -> BN3d -> ReLU).

    Matches the PyTorch module in training mode (BN uses batch statistics), with
    output_size fixed to (st*T, sh*H, sw*W) like the reference forward().
    """

    def __init__(self, in_channels, out_channels, kernel_size, stride=(1, 1, 1),
                 padding=0, bias=False, with_bn=True, with_relu=True, *,
                 key=None, max_block_frames=None):
        self.in_channels = in_channels
        self.out_channels = out_channels
        self.kernel_size = _triple(kernel_size)
        self.stride = _triple(stride)
        self.padding = _triple(padding)
        self.with_bn = with_bn
        self.with_relu = with_relu
        self.out_dtype = jnp.float32          # could be bf16 if downstream allows
        self._max_block_frames = max_block_frames or 64

        if key is None:
            key = jax.random.PRNGKey(42)
        k_w, k_b = jax.random.split(key)
        kt, kh, kw = self.kernel_size
        st, _, _ = self.stride
        pt, _, _ = self.padding
        # nn.ConvTranspose3d weight layout: (Cin, Cout, KT, KH, KW)
        self.weight = 0.05 * jax.random.normal(
            k_w, (in_channels, out_channels, kt, kh, kw), jnp.float32)
        self.conv_bias = (0.05 * jax.random.normal(k_b, (out_channels,),
                                                   jnp.float32)
                          if bias else None)
        # BatchNorm3d default affine init
        self.gamma = jnp.ones((out_channels,), jnp.float32)
        self.beta = jnp.zeros((out_channels,), jnp.float32)
        self.eps = 1e-5
        # TODO(synk): BN running-stat (momentum) buffers are not materialized; they
        # do not affect the train-mode forward output.

        # ---- static polyphase schedule over the temporal axis --------------
        # Output frame to = q*st + p gets taps d = r_p + i*st (i < m_p) applied to
        # input frame ti = q + off_p - i.  Stacking the max_m consecutive frames
        # ending at q + off_p (ascending ti) matches taps in descending d order.
        cg = kh * kw * in_channels
        r = [(p + pt) % st for p in range(st)]
        m = [((kt - r[p] + st - 1) // st) if r[p] < kt else 0 for p in range(st)]
        off = [(p + pt) // st for p in range(st)]
        self._max_m = max(max(m), 1)
        self._lpad = max(0, self._max_m - 1 - min(off))   # zero frames on the left
        self._rpad = max(off)                              # zero frames on the right
        self._span = self._lpad + self._rpad               # halo frames per tile
        self._starts = tuple(off[p] - self._max_m + 1 + self._lpad
                             for p in range(st))
        self._cg = cg

        # ---- fold all taps of each phase into one MXU contraction ----------
        # W_d[co, (e',f',ci)] = w[ci, co, d, kh-1-e', kw-1-f']  (spatial gather form)
        wg = jnp.transpose(jnp.flip(self.weight, axis=(3, 4)), (2, 1, 3, 4, 0))
        wg = wg.reshape(kt, out_channels, cg)              # (kt, Cout, Cg)
        blocks = []
        for p in range(st):
            cols = []
            for jj in range(self._max_m):                  # jj=0 is the lowest ti
                i = self._max_m - 1 - jj
                if i < m[p]:
                    cols.append(wg[r[p] + i * st])
                else:
                    cols.append(jnp.zeros((out_channels, cg), wg.dtype))
            blocks.append(jnp.concatenate(cols, axis=1))
        # (st, Cout, max_m*Cg) -- uniform K per phase (zero-padded slots)
        self._wfold = jnp.stack(blocks, axis=0).astype(jnp.bfloat16)

    def __call__(self, x):
        assert x.ndim == 5
        N, C, T, H, W = x.shape
        assert C == self.in_channels
        st, sh, sw = self.stride
        kt, kh, kw = self.kernel_size
        pt, ph, pw = self.padding
        To, Ho, Wo = st * T, sh * H, sw * W
        cout = self.out_channels

        # output_padding implied by output_size = (st*T, sh*H, sw*W)
        opad = (To - ((T - 1) * st - 2 * pt + kt),
                Ho - ((H - 1) * sh - 2 * ph + kh),
                Wo - ((W - 1) * sw - 2 * pw + kw))
        for o, s in zip(opad, self.stride):
            assert 0 <= o < max(s, 1), "invalid output_padding for this config"

        # ---- spatial taps / stride: identity for the common (k,1,1) case ----
        if kh == 1 and kw == 1 and sh == 1 and sw == 1:
            xs = x                                          # (N, Cin, T, Ho, Wo)
        else:
            # TODO(synk): the general spatial path still materializes a dilated +
            # kh*kw im2col copy of the (small) input in HBM; only the temporal axis
            # uses the zero-free polyphase form.
            cfg = ((0, 0, 0), (0, 0, 0), (0, 0, 0),
                   (kh - 1 - ph, kh - 1 - ph + opad[1], sh - 1),
                   (kw - 1 - pw, kw - 1 - pw + opad[2], sw - 1))
            xd = lax.pad(x, jnp.array(0.0, x.dtype), cfg)
            if kh == 1 and kw == 1:
                xs = xd
            else:
                xs = jnp.concatenate(
                    [xd[:, :, :, ih:ih + Ho, iw:iw + Wo]
                     for ih in range(kh) for iw in range(kw)], axis=1)
        cg = xs.shape[1]
        assert cg == self._cg
        hw = Ho * Wo

        # ---- (N, Cg, T, hw) -> (N, T, Cg, hw) bf16, temporal zero padding ----
        xs = jnp.transpose(xs.reshape(N, cg, T, hw), (0, 2, 1, 3))
        xs = xs.astype(jnp.bfloat16)
        xs = jnp.pad(xs, ((0, 0), (self._lpad, self._rpad), (0, 0), (0, 0)))

        # ---- generation-aware tile sizes ------------------------------------
        vmem_limit = _pick_vmem_limit()
        out_bytes = jnp.dtype(self.out_dtype).itemsize
        ct, qt = _pick_tiles(T, cout, cg, hw, st, self._span, self._max_m,
                             out_bytes, budget=vmem_limit,
                             frame_cap=self._max_block_frames)
        n_qt = T // qt
        win = qt + self._span
        if n_qt == 1:
            xt = xs[:, None]                                # (N, 1, T+span, Cg, hw)
        else:
            # duplicate the small temporal halo per tile so plain BlockSpecs pipeline
            idx = (jnp.arange(n_qt) * qt)[:, None] + jnp.arange(win)[None, :]
            xt = xs[:, idx]                                  # (N, n_qt, win, Cg, hw)
        xt = xt.reshape(N, n_qt, win * cg, hw)               # frame-major rows

        # ---- BN affine from batch statistics, or plain conv bias ------------
        if self.with_bn:
            ssum, ssq = _stats_pass(xt, self._wfold, ct=ct, qt=qt, cg=cg,
                                    starts=self._starts, vmem_limit=vmem_limit)
            cnt = float(N * To * hw)
            tot = jnp.sum(ssum, axis=(0, 1)).reshape(cout)
            tot2 = jnp.sum(ssq, axis=(0, 1)).reshape(cout)
            mean = tot / cnt
            # TODO(synk): E[x^2]-mean^2 can lose precision when |mean| >> std.
            var = jnp.maximum(tot2 / cnt - mean * mean, 0.0)
            inv = lax.rsqrt(var + self.eps)
            scale = (self.gamma * inv).reshape(cout, 1).astype(jnp.float32)
            # conv bias (if any) is cancelled exactly by the mean subtraction -> skip it
            shift = (self.beta - mean * self.gamma * inv).reshape(cout, 1)
            shift = shift.astype(jnp.float32)
        else:
            scale = jnp.ones((cout, 1), jnp.float32)
            b = (self.conv_bias if self.conv_bias is not None
                 else jnp.zeros((cout,), jnp.float32))
            shift = b.reshape(cout, 1).astype(jnp.float32)

        out = _conv_affine_pass(xt, self._wfold, scale, shift, ct=ct, qt=qt,
                                cg=cg, hw=hw, starts=self._starts,
                                relu=self.with_relu, out_dtype=self.out_dtype,
                                vmem_limit=vmem_limit)
        return out.reshape(N, cout, To, Ho, Wo)


# --------------------------- pure-JAX reference -------------------------------

def _reference_forward(x, weight, bias, gamma, beta, eps, stride, padding,
                       with_bn, with_relu):
    N, Cin, T, H, W = x.shape
    Cout = weight.shape[1]
    kt, kh, kw = weight.shape[2:]
    st, sh, sw = stride
    pt, ph, pw = padding
    To, Ho, Wo = st * T, sh * H, sw * W
    Tb, Hb, Wb = (T - 1) * st + kt, (H - 1) * sh + kh, (W - 1) * sw + kw
    cols = jnp.einsum('ncthw,codef->nodefthw', x, weight)
    buf = jnp.zeros((N, Cout, Tb, Hb, Wb), jnp.float32)
    for d in range(kt):
        for e in range(kh):
            for f in range(kw):
                buf = buf.at[:, :,
                             d:d + (T - 1) * st + 1:st,
                             e:e + (H - 1) * sh + 1:sh,
                             f:f + (W - 1) * sw + 1:sw].add(cols[:, :, d, e, f])
    opad = (To - (Tb - 2 * pt), Ho - (Hb - 2 * ph), Wo - (Wb - 2 * pw))
    buf = jnp.pad(buf, ((0, 0), (0, 0), (0, max(opad[0], 0)),
                        (0, max(opad[1], 0)), (0, max(opad[2], 0))))
    y = buf[:, :, pt:pt + To, ph:ph + Ho, pw:pw + Wo]
    if bias is not None:
        y = y + bias.reshape(1, -1, 1, 1, 1)
    if with_bn:
        mean = y.mean(axis=(0, 2, 3, 4), keepdims=True)
        var = y.var(axis=(0, 2, 3, 4), keepdims=True)   # biased, train-mode BN
        y = ((y - mean) * lax.rsqrt(var + eps) * gamma.reshape(1, -1, 1, 1, 1)
             + beta.reshape(1, -1, 1, 1, 1))
    if with_relu:
        y = jnp.maximum(y, 0.0)
    return y


# ------------------------------- main ----------------------------------------

if __name__ == "__main__":
    key = jax.random.PRNGKey(0)
    N, Cin, T, H, W = 2, 8, 4, 8, 8
    Cout = 16
    x = jax.random.normal(key, (N, Cin, T, H, W), dtype=jnp.float32)

    def _check(mod, y, with_bn, with_relu):
        y_ref = _reference_forward(x, mod.weight, mod.conv_bias, mod.gamma,
                                   mod.beta, mod.eps, mod.stride, mod.padding,
                                   with_bn, with_relu)
        err = float(jnp.max(jnp.abs(y - y_ref) / (1.0 + jnp.abs(y_ref))))
        assert err < 5e-2, err

    # Config A: typical SlowFast lateral deconv (temporal 2x upsample) + BN + ReLU
    modA = DeConvModule(Cin, Cout, kernel_size=(3, 1, 1), stride=(2, 1, 1),
                        padding=(1, 0, 0), bias=False, with_bn=True,
                        with_relu=True, key=jax.random.PRNGKey(42))
    yA = jax.block_until_ready(jax.jit(modA.__call__)(x))
    assert yA.shape == (N, Cout, 2 * T, H, W), yA.shape
    assert bool(jnp.all(yA >= 0.0))
    _check(modA, yA, True, True)

    # Config B: larger temporal stride, conv bias, no BN (exercises the bias/affine path)
    modB = DeConvModule(Cin, Cout, kernel_size=(5, 1, 1), stride=(4, 1, 1),
                        padding=(2, 0, 0), bias=True, with_bn=False,
                        with_relu=True, key=jax.random.PRNGKey(7))
    yB = jax.block_until_ready(jax.jit(modB.__call__)(x))
    assert yB.shape == (N, Cout, 4 * T, H, W), yB.shape
    _check(modB, yB, False, True)

    # Config C: same weights as A but with a small frame cap, exercising the
    # temporal grid axis + halo-duplicated input tiles (n_qt > 1).
    modC = DeConvModule(Cin, Cout, kernel_size=(3, 1, 1), stride=(2, 1, 1),
                        padding=(1, 0, 0), bias=False, with_bn=True,
                        with_relu=True, key=jax.random.PRNGKey(42),
                        max_block_frames=4)
    yC = jax.block_until_ready(jax.jit(modC.__call__)(x))
    assert yC.shape == (N, Cout, 2 * T, H, W), yC.shape
    _check(modC, yC, True, True)

    print("KERNEL_OK")
</pallas_src>

<mosaic_0001>
module attributes {stable_mosaic.version = 11 : i64} {
  func.func @_stats_kernel(%arg0: i32, %arg1: i32, %arg2: i32, %arg3: memref<1x1x48x64xbf16, #tpu.memory_space<vmem>>, %arg4: memref<2x16x16xbf16, #tpu.memory_space<vmem>>, %arg5: memref<1x1x16x1xf32, #tpu.memory_space<vmem>>, %arg6: memref<1x1x16x1xf32, #tpu.memory_space<vmem>>) attributes {dimension_semantics = [#tpu.dimension_semantics<parallel>, #tpu.dimension_semantics<parallel>, #tpu.dimension_semantics<parallel>], iteration_bounds = array<i64: 2, 1, 1>, scalar_prefetch = 0 : i64, scratch_operands = 0 : i64, tpu.core_type = #tpu.core_type<tc>, window_params = [{transform_indices = @transform_0, window_bounds = array<i64: 1, 1, 48, 64>}, {transform_indices = @transform_1, window_bounds = array<i64: 2, 16, 16>}, {transform_indices = @transform_2, window_bounds = array<i64: 1, 1, 16, 1>}, {transform_indices = @transform_3, window_bounds = array<i64: 1, 1, 16, 1>}]} {
    %cst = arith.constant 0.000000e+00 : f32
    %0 = vector.broadcast %cst : f32 to vector<16x1xf32>
    %cst_0 = arith.constant 0.000000e+00 : f32
    %1 = vector.broadcast %cst_0 : f32 to vector<16x1xf32>
    %c0 = arith.constant 0 : index
    %c0_1 = arith.constant 0 : index
    %c0_2 = arith.constant 0 : index
    %2 = vector.load %arg4[%c0, %c0_1, %c0_2] : memref<2x16x16xbf16, #tpu.memory_space<vmem>>, vector<1x16x16xbf16>
    %3 = vector.shape_cast %2 : vector<1x16x16xbf16> to vector<16x16xbf16>
    %c0_3 = arith.constant 0 : index
    %c0_4 = arith.constant 0 : index
    %c0_5 = arith.constant 0 : index
    %c0_6 = arith.constant 0 : index
    %4 = vector.load %arg3[%c0_3, %c0_4, %c0_5, %c0_6] : memref<1x1x48x64xbf16, #tpu.memory_space<vmem>>, vector<1x1x16x64xbf16>
    %5 = vector.shape_cast %4 : vector<1x1x16x64xbf16> to vector<16x64xbf16>
    %cst_7 = arith.constant dense<0.000000e+00> : vector<16x64xf32>
    %6 = tpu.matmul %3, %5, %cst_7 {dimension_numbers = #tpu.dot_dimension_numbers<[1], [0], [0], [1], [0, 0, 1, 1], [], []>} : vector<16x16xbf16>, vector<16x64xbf16>, vector<16x64xf32> -> vector<16x64xf32>
    %cst_8 = arith.constant dense<0.000000e+00> : vector<16xf32>
    %7 = vector.multi_reduction <add>, %6, %cst_8 [1] : vector<16x64xf32> to vector<16xf32>
    %8 = vector.shape_cast %7 : vector<16xf32> to vector<16x1xf32>
    %9 = arith.addf %0, %8 : vector<16x1xf32>
    %10 = arith.mulf %6, %6 : vector<16x64xf32>
    %cst_9 = arith.constant dense<0.000000e+00> : vector<16xf32>
    %11 = vector.multi_reduction <add>, %10, %cst_9 [1] : vector<16x64xf32> to vector<16xf32>
    %12 = vector.shape_cast %11 : vector<16xf32> to vector<16x1xf32>
    %13 = arith.addf %1, %12 : vector<16x1xf32>
    %c1 = arith.constant 1 : index
    %c0_10 = arith.constant 0 : index
    %c0_11 = arith.constant 0 : index
    %14 = vector.load %arg4[%c1, %c0_10, %c0_11] : memref<2x16x16xbf16, #tpu.memory_space<vmem>>, vector<1x16x16xbf16>
    %15 = vector.shape_cast %14 : vector<1x16x16xbf16> to vector<16x16xbf16>
    %c0_12 = arith.constant 0 : index
    %c0_13 = arith.constant 0 : index
    %c8 = arith.constant 8 : index
    %c0_14 = arith.constant 0 : index
    %16 = vector.load %arg3[%c0_12, %c0_13, %c8, %c0_14] : memref<1x1x48x64xbf16, #tpu.memory_space<vmem>>, vector<1x1x16x64xbf16>
    %17 = vector.shape_cast %16 : vector<1x1x16x64xbf16> to vector<16x64xbf16>
    %cst_15 = arith.constant dense<0.000000e+00> : vector<16x64xf32>
    %18 = tpu.matmul %15, %17, %cst_15 {dimension_numbers = #tpu.dot_dimension_numbers<[1], [0], [0], [1], [0, 0, 1, 1], [], []>} : vector<16x16xbf16>, vector<16x64xbf16>, vector<16x64xf32> -> vector<16x64xf32>
    %cst_16 = arith.constant dense<0.000000e+00> : vector<16xf32>
    %19 = vector.multi_reduction <add>, %18, %cst_16 [1] : vector<16x64xf32> to vector<16xf32>
    %20 = vector.shape_cast %19 : vector<16xf32> to vector<16x1xf32>
    %21 = arith.addf %9, %20 : vector<16x1xf32>
    %22 = arith.mulf %18, %18 : vector<16x64xf32>
    %cst_17 = arith.constant dense<0.000000e+00> : vector<16xf32>
    %23 = vector.multi_reduction <add>, %22, %cst_17 [1] : vector<16x64xf32> to vector<16xf32>
    %24 = vector.shape_cast %23 : vector<16xf32> to vector<16x1xf32>
    %25 = arith.addf %13, %24 : vector<16x1xf32>
    %c0_18 = arith.constant 0 : index
    %c0_19 = arith.constant 0 : index
    %c0_20 = arith.constant 0 : index
    %26 = vector.load %arg4[%c0_18, %c0_19, %c0_20] : memref<2x16x16xbf16, #tpu.memory_space<vmem>>, vector<1x16x16xbf16>
    %27 = vector.shape_cast %26 : vector<1x16x16xbf16> to vector<16x16xbf16>
    %c0_21 = arith.constant 0 : index
    %c0_22 = arith.constant 0 : index
    %c8_23 = arith.constant 8 : index
    %c0_24 = arith.constant 0 : index
    %28 = vector.load %arg3[%c0_21, %c0_22, %c8_23, %c0_24] : memref<1x1x48x64xbf16, #tpu.memory_space<vmem>>, vector<1x1x16x64xbf16>
    %29 = vector.shape_cast %28 : vector<1x1x16x64xbf16> to vector<16x64xbf16>
    %cst_25 = arith.constant dense<0.000000e+00> : vector<16x64xf32>
    %30 = tpu.matmul %27, %29, %cst_25 {dimension_numbers = #tpu.dot_dimension_numbers<[1], [0], [0], [1], [0, 0, 1, 1], [], []>} : vector<16x16xbf16>, vector<16x64xbf16>, vector<16x64xf32> -> vector<16x64xf32>
    %cst_26 = arith.constant dense<0.000000e+00> : vector<16xf32>
    %31 = vector.multi_reduction <add>, %30, %cst_26 [1] : vector<16x64xf32> to vector<16xf32>
    %32 = vector.shape_cast %31 : vector<16xf32> to vector<16x1xf32>
    %33 = arith.addf %21, %32 : vector<16x1xf32>
    %34 = arith.mulf %30, %30 : vector<16x64xf32>
    %cst_27 = arith.constant dense<0.000000e+00> : vector<16xf32>
    %35 = vector.multi_reduction <add>, %34, %cst_27 [1] : vector<16x64xf32> to vector<16xf32>
    %36 = vector.shape_cast %35 : vector<16xf32> to vector<16x1xf32>
    %37 = arith.addf %25, %36 : vector<16x1xf32>
    %c1_28 = arith.constant 1 : index
    %c0_29 = arith.constant 0 : index
    %c0_30 = arith.constant 0 : index
    %38 = vector.load %arg4[%c1_28, %c0_29, %c0_30] : memref<2x16x16xbf16, #tpu.memory_space<vmem>>, vector<1x16x16xbf16>
    %39 = vector.shape_cast %38 : vector<1x16x16xbf16> to vector<16x16xbf16>
    %c0_31 = arith.constant 0 : index
    %c0_32 = arith.constant 0 : index
    %c16 = arith.constant 16 : index
    %c0_33 = arith.constant 0 : index
    %40 = vector.load %arg3[%c0_31, %c0_32, %c16, %c0_33] : memref<1x1x48x64xbf16, #tpu.memory_space<vmem>>, vector<1x1x16x64xbf16>
    %41 = vector.shape_cast %40 : vector<1x1x16x64xbf16> to vector<16x64xbf16>
    %cst_34 = arith.constant dense<0.000000e+00> : vector<16x64xf32>
    %42 = tpu.matmul %39, %41, %cst_34 {dimension_numbers = #tpu.dot_dimension_numbers<[1], [0], [0], [1], [0, 0, 1, 1], [], []>} : vector<16x16xbf16>, vector<16x64xbf16>, vector<16x64xf32> -> vector<16x64xf32>
    %cst_35 = arith.constant dense<0.000000e+00> : vector<16xf32>
    %43 = vector.multi_reduction <add>, %42, %cst_35 [1] : vector<16x64xf32> to vector<16xf32>
    %44 = vector.shape_cast %43 : vector<16xf32> to vector<16x1xf32>
    %45 = arith.addf %33, %44 : vector<16x1xf32>
    %46 = arith.mulf %42, %42 : vector<16x64xf32>
    %cst_36 = arith.constant dense<0.000000e+00> : vector<16xf32>
    %47 = vector.multi_reduction <add>, %46, %cst_36 [1] : vector<16x64xf32> to vector<16xf32>
    %48 = vector.shape_cast %47 : vector<16xf32> to vector<16x1xf32>
    %49 = arith.addf %37, %48 : vector<16x1xf32>
    %c0_37 = arith.constant 0 : index
    %c0_38 = arith.constant 0 : index
    %c0_39 = arith.constant 0 : index
    %50 = vector.load %arg4[%c0_37, %c0_38, %c0_39] : memref<2x16x16xbf16, #tpu.memory_space<vmem>>, vector<1x16x16xbf16>
    %51 = vector.shape_cast %50 : vector<1x16x16xbf16> to vector<16x16xbf16>
    %c0_40 = arith.constant 0 : index
    %c0_41 = arith.constant 0 : index
    %c16_42 = arith.constant 16 : index
    %c0_43 = arith.constant 0 : index
    %52 = vector.load %arg3[%c0_40, %c0_41, %c16_42, %c0_43] : memref<1x1x48x64xbf16, #tpu.memory_space<vmem>>, vector<1x1x16x64xbf16>
    %53 = vector.shape_cast %52 : vector<1x1x16x64xbf16> to vector<16x64xbf16>
    %cst_44 = arith.constant dense<0.000000e+00> : vector<16x64xf32>
    %54 = tpu.matmul %51, %53, %cst_44 {dimension_numbers = #tpu.dot_dimension_numbers<[1], [0], [0], [1], [0, 0, 1, 1], [], []>} : vector<16x16xbf16>, vector<16x64xbf16>, vector<16x64xf32> -> vector<16x64xf32>
    %cst_45 = arith.constant dense<0.000000e+00> : vector<16xf32>
    %55 = vector.multi_reduction <add>, %54, %cst_45 [1] : vector<16x64xf32> to vector<16xf32>
    %56 = vector.shape_cast %55 : vector<16xf32> to vector<16x1xf32>
    %57 = arith.addf %45, %56 : vector<16x1xf32>
    %58 = arith.mulf %54, %54 : vector<16x64xf32>
    %cst_46 = arith.constant dense<0.000000e+00> : vector<16xf32>
    %59 = vector.multi_reduction <add>, %58, %cst_46 [1] : vector<16x64xf32> to vector<16xf32>
    %60 = vector.shape_cast %59 : vector<16xf32> to vector<16x1xf32>
    %61 = arith.addf %49, %60 : vector<16x1xf32>
    %c1_47 = arith.constant 1 : index
    %c0_48 = arith.constant 0 : index
    %c0_49 = arith.constant 0 : index
    %62 = vector.load %arg4[%c1_47, %c0_48, %c0_49] : memref<2x16x16xbf16, #tpu.memory_space<vmem>>, vector<1x16x16xbf16>
    %63 = vector.shape_cast %62 : vector<1x16x16xbf16> to vector<16x16xbf16>
    %c0_50 = arith.constant 0 : index
    %c0_51 = arith.constant 0 : index
    %c24 = arith.constant 24 : index
    %c0_52 = arith.constant 0 : index
    %64 = vector.load %arg3[%c0_50, %c0_51, %c24, %c0_52] : memref<1x1x48x64xbf16, #tpu.memory_space<vmem>>, vector<1x1x16x64xbf16>
    %65 = vector.shape_cast %64 : vector<1x1x16x64xbf16> to vector<16x64xbf16>
    %cst_53 = arith.constant dense<0.000000e+00> : vector<16x64xf32>
    %66 = tpu.matmul %63, %65, %cst_53 {dimension_numbers = #tpu.dot_dimension_numbers<[1], [0], [0], [1], [0, 0, 1, 1], [], []>} : vector<16x16xbf16>, vector<16x64xbf16>, vector<16x64xf32> -> vector<16x64xf32>
    %cst_54 = arith.constant dense<0.000000e+00> : vector<16xf32>
    %67 = vector.multi_reduction <add>, %66, %cst_54 [1] : vector<16x64xf32> to vector<16xf32>
    %68 = vector.shape_cast %67 : vector<16xf32> to vector<16x1xf32>
    %69 = arith.addf %57, %68 : vector<16x1xf32>
    %70 = arith.mulf %66, %66 : vector<16x64xf32>
    %cst_55 = arith.constant dense<0.000000e+00> : vector<16xf32>
    %71 = vector.multi_reduction <add>, %70, %cst_55 [1] : vector<16x64xf32> to vector<16xf32>
    %72 = vector.shape_cast %71 : vector<16xf32> to vector<16x1xf32>
    %73 = arith.addf %61, %72 : vector<16x1xf32>
    %c0_56 = arith.constant 0 : index
    %c0_57 = arith.constant 0 : index
    %c0_58 = arith.constant 0 : index
    %74 = vector.load %arg4[%c0_56, %c0_57, %c0_58] : memref<2x16x16xbf16, #tpu.memory_space<vmem>>, vector<1x16x16xbf16>
    %75 = vector.shape_cast %74 : vector<1x16x16xbf16> to vector<16x16xbf16>
    %c0_59 = arith.constant 0 : index
    %c0_60 = arith.constant 0 : index
    %c24_61 = arith.constant 24 : index
    %c0_62 = arith.constant 0 : index
    %76 = vector.load %arg3[%c0_59, %c0_60, %c24_61, %c0_62] : memref<1x1x48x64xbf16, #tpu.memory_space<vmem>>, vector<1x1x16x64xbf16>
    %77 = vector.shape_cast %76 : vector<1x1x16x64xbf16> to vector<16x64xbf16>
    %cst_63 = arith.constant dense<0.000000e+00> : vector<16x64xf32>
    %78 = tpu.matmul %75, %77, %cst_63 {dimension_numbers = #tpu.dot_dimension_numbers<[1], [0], [0], [1], [0, 0, 1, 1], [], []>} : vector<16x16xbf16>, vector<16x64xbf16>, vector<16x64xf32> -> vector<16x64xf32>
    %cst_64 = arith.constant dense<0.000000e+00> : vector<16xf32>
    %79 = vector.multi_reduction <add>, %78, %cst_64 [1] : vector<16x64xf32> to vector<16xf32>
    %80 = vector.shape_cast %79 : vector<16xf32> to vector<16x1xf32>
    %81 = arith.addf %69, %80 : vector<16x1xf32>
    %82 = arith.mulf %78, %78 : vector<16x64xf32>
    %cst_65 = arith.constant dense<0.000000e+00> : vector<16xf32>
    %83 = vector.multi_reduction <add>, %82, %cst_65 [1] : vector<16x64xf32> to vector<16xf32>
    %84 = vector.shape_cast %83 : vector<16xf32> to vector<16x1xf32>
    %85 = arith.addf %73, %84 : vector<16x1xf32>
    %c1_66 = arith.constant 1 : index
    %c0_67 = arith.constant 0 : index
    %c0_68 = arith.constant 0 : index
    %86 = vector.load %arg4[%c1_66, %c0_67, %c0_68] : memref<2x16x16xbf16, #tpu.memory_space<vmem>>, vector<1x16x16xbf16>
    %87 = vector.shape_cast %86 : vector<1x16x16xbf16> to vector<16x16xbf16>
    %c0_69 = arith.constant 0 : index
    %c0_70 = arith.constant 0 : index
    %c32 = arith.constant 32 : index
    %c0_71 = arith.constant 0 : index
    %88 = vector.load %arg3[%c0_69, %c0_70, %c32, %c0_71] : memref<1x1x48x64xbf16, #tpu.memory_space<vmem>>, vector<1x1x16x64xbf16>
    %89 = vector.shape_cast %88 : vector<1x1x16x64xbf16> to vector<16x64xbf16>
    %cst_72 = arith.constant dense<0.000000e+00> : vector<16x64xf32>
    %90 = tpu.matmul %87, %89, %cst_72 {dimension_numbers = #tpu.dot_dimension_numbers<[1], [0], [0], [1], [0, 0, 1, 1], [], []>} : vector<16x16xbf16>, vector<16x64xbf16>, vector<16x64xf32> -> vector<16x64xf32>
    %cst_73 = arith.constant dense<0.000000e+00> : vector<16xf32>
    %91 = vector.multi_reduction <add>, %90, %cst_73 [1] : vector<16x64xf32> to vector<16xf32>
    %92 = vector.shape_cast %91 : vector<16xf32> to vector<16x1xf32>
    %93 = arith.addf %81, %92 : vector<16x1xf32>
    %94 = arith.mulf %90, %90 : vector<16x64xf32>
    %cst_74 = arith.constant dense<0.000000e+00> : vector<16xf32>
    %95 = vector.multi_reduction <add>, %94, %cst_74 [1] : vector<16x64xf32> to vector<16xf32>
    %96 = vector.shape_cast %95 : vector<16xf32> to vector<16x1xf32>
    %97 = arith.addf %85, %96 : vector<16x1xf32>
    %c0_75 = arith.constant 0 : index
    %c0_76 = arith.constant 0 : index
    %c0_77 = arith.constant 0 : index
    %c0_78 = arith.constant 0 : index
    %98 = vector.load %arg5[%c0_75, %c0_76, %c0_77, %c0_78] : memref<1x1x16x1xf32, #tpu.memory_space<vmem>>, vector<1x1x16x1xf32>
    %99 = vector.shape_cast %98 : vector<1x1x16x1xf32> to vector<16x1xf32>
    %100 = vector.shape_cast %93 : vector<16x1xf32> to vector<1x1x16x1xf32>
    tpu.vector_store %arg5[%c0_75, %c0_76, %c0_77, %c0_78], %100 {strides = array<i32>} : memref<1x1x16x1xf32, #tpu.memory_space<vmem>>, vector<1x1x16x1xf32>,
    %c0_79 = arith.constant 0 : index
    %c0_80 = arith.constant 0 : index
    %c0_81 = arith.constant 0 : index
    %c0_82 = arith.constant 0 : index
    %101 = vector.load %arg6[%c0_79, %c0_80, %c0_81, %c0_82] : memref<1x1x16x1xf32, #tpu.memory_space<vmem>>, vector<1x1x16x1xf32>
    %102 = vector.shape_cast %101 : vector<1x1x16x1xf32> to vector<16x1xf32>
    %103 = vector.shape_cast %97 : vector<16x1xf32> to vector<1x1x16x1xf32>
    tpu.vector_store %arg6[%c0_79, %c0_80, %c0_81, %c0_82], %103 {strides = array<i32>} : memref<1x1x16x1xf32, #tpu.memory_space<vmem>>, vector<1x1x16x1xf32>,
    return
  }
  func.func @transform_0(%arg0: i32, %arg1: i32, %arg2: i32) -> (i32, i32, i32, i32) {
    %c0_i32 = arith.constant 0 : i32
    %c0_i32_0 = arith.constant 0 : i32
    %c0_i32_1 = arith.constant 0 : i32
    return %arg0, %arg2, %c0_i32, %c0_i32_0 : i32, i32, i32, i32
  }
  func.func @transform_1(%arg0: i32, %arg1: i32, %arg2: i32) -> (i32, i32, i32) {
    %c0_i32 = arith.constant 0 : i32
    %c0_i32_0 = arith.constant 0 : i32
    %c0_i32_1 = arith.constant 0 : i32
    return %c0_i32, %arg1, %c0_i32_0 : i32, i32, i32
  }
  func.func @transform_2(%arg0: i32, %arg1: i32, %arg2: i32) -> (i32, i32, i32, i32) {
    %c0_i32 = arith.constant 0 : i32
    %c0_i32_0 = arith.constant 0 : i32
    return %arg0, %arg2, %arg1, %c0_i32 : i32, i32, i32, i32
  }
  func.func @transform_3(%arg0: i32, %arg1: i32, %arg2: i32) -> (i32, i32, i32, i32) {
    %c0_i32 = arith.constant 0 : i32
    %c0_i32_0 = arith.constant 0 : i32
    return %arg0, %arg2, %arg1, %c0_i32 : i32, i32, i32, i32
  }
}

module attributes {stable_mosaic.version = 11 : i64} {
  func.func @_out_kernel(%arg0: i32, %arg1: i32, %arg2: i32, %arg3: memref<1x1x48x64xbf16, #tpu.memory_space<vmem>>, %arg4: memref<2x16x16xbf16, #tpu.memory_space<vmem>>, %arg5: memref<16x1xf32, #tpu.memory_space<vmem>>, %arg6: memref<16x1xf32, #tpu.memory_space<vmem>>, %arg7: memref<1x16x512xf32, #tpu.memory_space<vmem>>) attributes {dimension_semantics = [#tpu.dimension_semantics<parallel>, #tpu.dimension_semantics<parallel>, #tpu.dimension_semantics<parallel>], iteration_bounds = array<i64: 2, 1, 1>, scalar_prefetch = 0 : i64, scratch_operands = 0 : i64, tpu.core_type = #tpu.core_type<tc>, window_params = [{transform_indices = @transform_0, window_bounds = array<i64: 1, 1, 48, 64>}, {transform_indices = @transform_1, window_bounds = array<i64: 2, 16, 16>}, {transform_indices = @transform_2, window_bounds = array<i64: 16, 1>}, {transform_indices = @transform_3, window_bounds = array<i64: 16, 1>}, {transform_indices = @transform_4, window_bounds = array<i64: 1, 16, 512>}]} {
    %c0 = arith.constant 0 : index
    %c0_0 = arith.constant 0 : index
    %0 = vector.load %arg5[%c0, %c0_0] : memref<16x1xf32, #tpu.memory_space<vmem>>, vector<16x1xf32>
    %c0_1 = arith.constant 0 : index
    %c0_2 = arith.constant 0 : index
    %1 = vector.load %arg6[%c0_1, %c0_2] : memref<16x1xf32, #tpu.memory_space<vmem>>, vector<16x1xf32>
    %c0_3 = arith.constant 0 : index
    %c0_4 = arith.constant 0 : index
    %c0_5 = arith.constant 0 : index
    %2 = vector.load %arg4[%c0_3, %c0_4, %c0_5] : memref<2x16x16xbf16, #tpu.memory_space<vmem>>, vector<1x16x16xbf16>
    %3 = vector.shape_cast %2 : vector<1x16x16xbf16> to vector<16x16xbf16>
    %c0_6 = arith.constant 0 : index
    %c0_7 = arith.constant 0 : index
    %c0_8 = arith.constant 0 : index
    %c0_9 = arith.constant 0 : index
    %4 = vector.load %arg3[%c0_6, %c0_7, %c0_8, %c0_9] : memref<1x1x48x64xbf16, #tpu.memory_space<vmem>>, vector<1x1x16x64xbf16>
    %5 = vector.shape_cast %4 : vector<1x1x16x64xbf16> to vector<16x64xbf16>
    %cst = arith.constant dense<0.000000e+00> : vector<16x64xf32>
    %6 = tpu.matmul %3, %5, %cst {dimension_numbers = #tpu.dot_dimension_numbers<[1], [0], [0], [1], [0, 0, 1, 1], [], []>} : vector<16x16xbf16>, vector<16x64xbf16>, vector<16x64xf32> -> vector<16x64xf32>
    %7 = vector.broadcast %0 : vector<16x1xf32> to vector<16x64xf32>
    %8 = arith.mulf %6, %7 : vector<16x64xf32>
    %9 = vector.broadcast %1 : vector<16x1xf32> to vector<16x64xf32>
    %10 = arith.addf %8, %9 : vector<16x64xf32>
    %cst_10 = arith.constant 0.000000e+00 : f32
    %11 = vector.broadcast %cst_10 : f32 to vector<16x64xf32>
    %12 = arith.maximumf %10, %11 : vector<16x64xf32>
    %c0_11 = arith.constant 0 : index
    %c0_12 = arith.constant 0 : index
    %c0_13 = arith.constant 0 : index
    %13 = vector.load %arg7[%c0_11, %c0_12, %c0_13] : memref<1x16x512xf32, #tpu.memory_space<vmem>>, vector<1x16x64xf32>
    %14 = vector.shape_cast %13 : vector<1x16x64xf32> to vector<16x64xf32>
    %15 = vector.shape_cast %12 : vector<16x64xf32> to vector<1x16x64xf32>
    tpu.vector_store %arg7[%c0_11, %c0_12, %c0_13], %15 {strides = array<i32>} : memref<1x16x512xf32, #tpu.memory_space<vmem>>, vector<1x16x64xf32>,
    %c1 = arith.constant 1 : index
    %c0_14 = arith.constant 0 : index
    %c0_15 = arith.constant 0 : index
    %16 = vector.load %arg4[%c1, %c0_14, %c0_15] : memref<2x16x16xbf16, #tpu.memory_space<vmem>>, vector<1x16x16xbf16>
    %17 = vector.shape_cast %16 : vector<1x16x16xbf16> to vector<16x16xbf16>
    %c0_16 = arith.constant 0 : index
    %c0_17 = arith.constant 0 : index
    %c8 = arith.constant 8 : index
    %c0_18 = arith.constant 0 : index
    %18 = vector.load %arg3[%c0_16, %c0_17, %c8, %c0_18] : memref<1x1x48x64xbf16, #tpu.memory_space<vmem>>, vector<1x1x16x64xbf16>
    %19 = vector.shape_cast %18 : vector<1x1x16x64xbf16> to vector<16x64xbf16>
    %cst_19 = arith.constant dense<0.000000e+00> : vector<16x64xf32>
    %20 = tpu.matmul %17, %19, %cst_19 {dimension_numbers = #tpu.dot_dimension_numbers<[1], [0], [0], [1], [0, 0, 1, 1], [], []>} : vector<16x16xbf16>, vector<16x64xbf16>, vector<16x64xf32> -> vector<16x64xf32>
    %21 = vector.broadcast %0 : vector<16x1xf32> to vector<16x64xf32>
    %22 = arith.mulf %20, %21 : vector<16x64xf32>
    %23 = vector.broadcast %1 : vector<16x1xf32> to vector<16x64xf32>
    %24 = arith.addf %22, %23 : vector<16x64xf32>
    %cst_20 = arith.constant 0.000000e+00 : f32
    %25 = vector.broadcast %cst_20 : f32 to vector<16x64xf32>
    %26 = arith.maximumf %24, %25 : vector<16x64xf32>
    %c0_21 = arith.constant 0 : index
    %c0_22 = arith.constant 0 : index
    %c64 = arith.constant 64 : index
    %27 = vector.load %arg7[%c0_21, %c0_22, %c64] : memref<1x16x512xf32, #tpu.memory_space<vmem>>, vector<1x16x64xf32>
    %28 = vector.shape_cast %27 : vector<1x16x64xf32> to vector<16x64xf32>
    %29 = vector.shape_cast %26 : vector<16x64xf32> to vector<1x16x64xf32>
    tpu.vector_store %arg7[%c0_21, %c0_22, %c64], %29 {strides = array<i32>} : memref<1x16x512xf32, #tpu.memory_space<vmem>>, vector<1x16x64xf32>,
    %c0_23 = arith.constant 0 : index
    %c0_24 = arith.constant 0 : index
    %c0_25 = arith.constant 0 : index
    %30 = vector.load %arg4[%c0_23, %c0_24, %c0_25] : memref<2x16x16xbf16, #tpu.memory_space<vmem>>, vector<1x16x16xbf16>
    %31 = vector.shape_cast %30 : vector<1x16x16xbf16> to vector<16x16xbf16>
    %c0_26 = arith.constant 0 : index
    %c0_27 = arith.constant 0 : index
    %c8_28 = arith.constant 8 : index
    %c0_29 = arith.constant 0 : index
    %32 = vector.load %arg3[%c0_26, %c0_27, %c8_28, %c0_29] : memref<1x1x48x64xbf16, #tpu.memory_space<vmem>>, vector<1x1x16x64xbf16>
    %33 = vector.shape_cast %32 : vector<1x1x16x64xbf16> to vector<16x64xbf16>
    %cst_30 = arith.constant dense<0.000000e+00> : vector<16x64xf32>
    %34 = tpu.matmul %31, %33, %cst_30 {dimension_numbers = #tpu.dot_dimension_numbers<[1], [0], [0], [1], [0, 0, 1, 1], [], []>} : vector<16x16xbf16>, vector<16x64xbf16>, vector<16x64xf32> -> vector<16x64xf32>
    %35 = vector.broadcast %0 : vector<16x1xf32> to vector<16x64xf32>
    %36 = arith.mulf %34, %35 : vector<16x64xf32>
    %37 = vector.broadcast %1 : vector<16x1xf32> to vector<16x64xf32>
    %38 = arith.addf %36, %37 : vector<16x64xf32>
    %cst_31 = arith.constant 0.000000e+00 : f32
    %39 = vector.broadcast %cst_31 : f32 to vector<16x64xf32>
    %40 = arith.maximumf %38, %39 : vector<16x64xf32>
    %c0_32 = arith.constant 0 : index
    %c0_33 = arith.constant 0 : index
    %c128 = arith.constant 128 : index
    %41 = vector.load %arg7[%c0_32, %c0_33, %c128] : memref<1x16x512xf32, #tpu.memory_space<vmem>>, vector<1x16x64xf32>
    %42 = vector.shape_cast %41 : vector<1x16x64xf32> to vector<16x64xf32>
    %43 = vector.shape_cast %40 : vector<16x64xf32> to vector<1x16x64xf32>
    tpu.vector_store %arg7[%c0_32, %c0_33, %c128], %43 {strides = array<i32>} : memref<1x16x512xf32, #tpu.memory_space<vmem>>, vector<1x16x64xf32>,
    %c1_34 = arith.constant 1 : index
    %c0_35 = arith.constant 0 : index
    %c0_36 = arith.constant 0 : index
    %44 = vector.load %arg4[%c1_34, %c0_35, %c0_36] : memref<2x16x16xbf16, #tpu.memory_space<vmem>>, vector<1x16x16xbf16>
    %45 = vector.shape_cast %44 : vector<1x16x16xbf16> to vector<16x16xbf16>
    %c0_37 = arith.constant 0 : index
    %c0_38 = arith.constant 0 : index
    %c16 = arith.constant 16 : index
    %c0_39 = arith.constant 0 : index
    %46 = vector.load %arg3[%c0_37, %c0_38, %c16, %c0_39] : memref<1x1x48x64xbf16, #tpu.memory_space<vmem>>, vector<1x1x16x64xbf16>
    %47 = vector.shape_cast %46 : vector<1x1x16x64xbf16> to vector<16x64xbf16>
    %cst_40 = arith.constant dense<0.000000e+00> : vector<16x64xf32>
    %48 = tpu.matmul %45, %47, %cst_40 {dimension_numbers = #tpu.dot_dimension_numbers<[1], [0], [0], [1], [0, 0, 1, 1], [], []>} : vector<16x16xbf16>, vector<16x64xbf16>, vector<16x64xf32> -> vector<16x64xf32>
    %49 = vector.broadcast %0 : vector<16x1xf32> to vector<16x64xf32>
    %50 = arith.mulf %48, %49 : vector<16x64xf32>
    %51 = vector.broadcast %1 : vector<16x1xf32> to vector<16x64xf32>
    %52 = arith.addf %50, %51 : vector<16x64xf32>
    %cst_41 = arith.constant 0.000000e+00 : f32
    %53 = vector.broadcast %cst_41 : f32 to vector<16x64xf32>
    %54 = arith.maximumf %52, %53 : vector<16x64xf32>
    %c0_42 = arith.constant 0 : index
    %c0_43 = arith.constant 0 : index
    %c192 = arith.constant 192 : index
    %55 = vector.load %arg7[%c0_42, %c0_43, %c192] : memref<1x16x512xf32, #tpu.memory_space<vmem>>, vector<1x16x64xf32>
    %56 = vector.shape_cast %55 : vector<1x16x64xf32> to vector<16x64xf32>
    %57 = vector.shape_cast %54 : vector<16x64xf32> to vector<1x16x64xf32>
    tpu.vector_store %arg7[%c0_42, %c0_43, %c192], %57 {strides = array<i32>} : memref<1x16x512xf32, #tpu.memory_space<vmem>>, vector<1x16x64xf32>,
    %c0_44 = arith.constant 0 : index
    %c0_45 = arith.constant 0 : index
    %c0_46 = arith.constant 0 : index
    %58 = vector.load %arg4[%c0_44, %c0_45, %c0_46] : memref<2x16x16xbf16, #tpu.memory_space<vmem>>, vector<1x16x16xbf16>
    %59 = vector.shape_cast %58 : vector<1x16x16xbf16> to vector<16x16xbf16>
    %c0_47 = arith.constant 0 : index
    %c0_48 = arith.constant 0 : index
    %c16_49 = arith.constant 16 : index
    %c0_50 = arith.constant 0 : index
    %60 = vector.load %arg3[%c0_47, %c0_48, %c16_49, %c0_50] : memref<1x1x48x64xbf16, #tpu.memory_space<vmem>>, vector<1x1x16x64xbf16>
    %61 = vector.shape_cast %60 : vector<1x1x16x64xbf16> to vector<16x64xbf16>
    %cst_51 = arith.constant dense<0.000000e+00> : vector<16x64xf32>
    %62 = tpu.matmul %59, %61, %cst_51 {dimension_numbers = #tpu.dot_dimension_numbers<[1], [0], [0], [1], [0, 0, 1, 1], [], []>} : vector<16x16xbf16>, vector<16x64xbf16>, vector<16x64xf32> -> vector<16x64xf32>
    %63 = vector.broadcast %0 : vector<16x1xf32> to vector<16x64xf32>
    %64 = arith.mulf %62, %63 : vector<16x64xf32>
    %65 = vector.broadcast %1 : vector<16x1xf32> to vector<16x64xf32>
    %66 = arith.addf %64, %65 : vector<16x64xf32>
    %cst_52 = arith.constant 0.000000e+00 : f32
    %67 = vector.broadcast %cst_52 : f32 to vector<16x64xf32>
    %68 = arith.maximumf %66, %67 : vector<16x64xf32>
    %c0_53 = arith.constant 0 : index
    %c0_54 = arith.constant 0 : index
    %c256 = arith.constant 256 : index
    %69 = vector.load %arg7[%c0_53, %c0_54, %c256] : memref<1x16x512xf32, #tpu.memory_space<vmem>>, vector<1x16x64xf32>
    %70 = vector.shape_cast %69 : vector<1x16x64xf32> to vector<16x64xf32>
    %71 = vector.shape_cast %68 : vector<16x64xf32> to vector<1x16x64xf32>
    tpu.vector_store %arg7[%c0_53, %c0_54, %c256], %71 {strides = array<i32>} : memref<1x16x512xf32, #tpu.memory_space<vmem>>, vector<1x16x64xf32>,
    %c1_55 = arith.constant 1 : index
    %c0_56 = arith.constant 0 : index
    %c0_57 = arith.constant 0 : index
    %72 = vector.load %arg4[%c1_55, %c0_56, %c0_57] : memref<2x16x16xbf16, #tpu.memory_space<vmem>>, vector<1x16x16xbf16>
    %73 = vector.shape_cast %72 : vector<1x16x16xbf16> to vector<16x16xbf16>
    %c0_58 = arith.constant 0 : index
    %c0_59 = arith.constant 0 : index
    %c24 = arith.constant 24 : index
    %c0_60 = arith.constant 0 : index
    %74 = vector.load %arg3[%c0_58, %c0_59, %c24, %c0_60] : memref<1x1x48x64xbf16, #tpu.memory_space<vmem>>, vector<1x1x16x64xbf16>
    %75 = vector.shape_cast %74 : vector<1x1x16x64xbf16> to vector<16x64xbf16>
    %cst_61 = arith.constant dense<0.000000e+00> : vector<16x64xf32>
    %76 = tpu.matmul %73, %75, %cst_61 {dimension_numbers = #tpu.dot_dimension_numbers<[1], [0], [0], [1], [0, 0, 1, 1], [], []>} : vector<16x16xbf16>, vector<16x64xbf16>, vector<16x64xf32> -> vector<16x64xf32>
    %77 = vector.broadcast %0 : vector<16x1xf32> to vector<16x64xf32>
    %78 = arith.mulf %76, %77 : vector<16x64xf32>
    %79 = vector.broadcast %1 : vector<16x1xf32> to vector<16x64xf32>
    %80 = arith.addf %78, %79 : vector<16x64xf32>
    %cst_62 = arith.constant 0.000000e+00 : f32
    %81 = vector.broadcast %cst_62 : f32 to vector<16x64xf32>
    %82 = arith.maximumf %80, %81 : vector<16x64xf32>
    %c0_63 = arith.constant 0 : index
    %c0_64 = arith.constant 0 : index
    %c320 = arith.constant 320 : index
    %83 = vector.load %arg7[%c0_63, %c0_64, %c320] : memref<1x16x512xf32, #tpu.memory_space<vmem>>, vector<1x16x64xf32>
    %84 = vector.shape_cast %83 : vector<1x16x64xf32> to vector<16x64xf32>
    %85 = vector.shape_cast %82 : vector<16x64xf32> to vector<1x16x64xf32>
    tpu.vector_store %arg7[%c0_63, %c0_64, %c320], %85 {strides = array<i32>} : memref<1x16x512xf32, #tpu.memory_space<vmem>>, vector<1x16x64xf32>,
    %c0_65 = arith.constant 0 : index
    %c0_66 = arith.constant 0 : index
    %c0_67 = arith.constant 0 : index
    %86 = vector.load %arg4[%c0_65, %c0_66, %c0_67] : memref<2x16x16xbf16, #tpu.memory_space<vmem>>, vector<1x16x16xbf16>
    %87 = vector.shape_cast %86 : vector<1x16x16xbf16> to vector<16x16xbf16>
    %c0_68 = arith.constant 0 : index
    %c0_69 = arith.constant 0 : index
    %c24_70 = arith.constant 24 : index
    %c0_71 = arith.constant 0 : index
    %88 = vector.load %arg3[%c0_68, %c0_69, %c24_70, %c0_71] : memref<1x1x48x64xbf16, #tpu.memory_space<vmem>>, vector<1x1x16x64xbf16>
    %89 = vector.shape_cast %88 : vector<1x1x16x64xbf16> to vector<16x64xbf16>
    %cst_72 = arith.constant dense<0.000000e+00> : vector<16x64xf32>
    %90 = tpu.matmul %87, %89, %cst_72 {dimension_numbers = #tpu.dot_dimension_numbers<[1], [0], [0], [1], [0, 0, 1, 1], [], []>} : vector<16x16xbf16>, vector<16x64xbf16>, vector<16x64xf32> -> vector<16x64xf32>
    %91 = vector.broadcast %0 : vector<16x1xf32> to vector<16x64xf32>
    %92 = arith.mulf %90, %91 : vector<16x64xf32>
    %93 = vector.broadcast %1 : vector<16x1xf32> to vector<16x64xf32>
    %94 = arith.addf %92, %93 : vector<16x64xf32>
    %cst_73 = arith.constant 0.000000e+00 : f32
    %95 = vector.broadcast %cst_73 : f32 to vector<16x64xf32>
    %96 = arith.maximumf %94, %95 : vector<16x64xf32>
    %c0_74 = arith.constant 0 : index
    %c0_75 = arith.constant 0 : index
    %c384 = arith.constant 384 : index
    %97 = vector.load %arg7[%c0_74, %c0_75, %c384] : memref<1x16x512xf32, #tpu.memory_space<vmem>>, vector<1x16x64xf32>
    %98 = vector.shape_cast %97 : vector<1x16x64xf32> to vector<16x64xf32>
    %99 = vector.shape_cast %96 : vector<16x64xf32> to vector<1x16x64xf32>
    tpu.vector_store %arg7[%c0_74, %c0_75, %c384], %99 {strides = array<i32>} : memref<1x16x512xf32, #tpu.memory_space<vmem>>, vector<1x16x64xf32>,
    %c1_76 = arith.constant 1 : index
    %c0_77 = arith.constant 0 : index
    %c0_78 = arith.constant 0 : index
    %100 = vector.load %arg4[%c1_76, %c0_77, %c0_78] : memref<2x16x16xbf16, #tpu.memory_space<vmem>>, vector<1x16x16xbf16>
    %101 = vector.shape_cast %100 : vector<1x16x16xbf16> to vector<16x16xbf16>
    %c0_79 = arith.constant 0 : index
    %c0_80 = arith.constant 0 : index
    %c32 = arith.constant 32 : index
    %c0_81 = arith.constant 0 : index
    %102 = vector.load %arg3[%c0_79, %c0_80, %c32, %c0_81] : memref<1x1x48x64xbf16, #tpu.memory_space<vmem>>, vector<1x1x16x64xbf16>
    %103 = vector.shape_cast %102 : vector<1x1x16x64xbf16> to vector<16x64xbf16>
    %cst_82 = arith.constant dense<0.000000e+00> : vector<16x64xf32>
    %104 = tpu.matmul %101, %103, %cst_82 {dimension_numbers = #tpu.dot_dimension_numbers<[1], [0], [0], [1], [0, 0, 1, 1], [], []>} : vector<16x16xbf16>, vector<16x64xbf16>, vector<16x64xf32> -> vector<16x64xf32>
    %105 = vector.broadcast %0 : vector<16x1xf32> to vector<16x64xf32>
    %106 = arith.mulf %104, %105 : vector<16x64xf32>
    %107 = vector.broadcast %1 : vector<16x1xf32> to vector<16x64xf32>
    %108 = arith.addf %106, %107 : vector<16x64xf32>
    %cst_83 = arith.constant 0.000000e+00 : f32
    %109 = vector.broadcast %cst_83 : f32 to vector<16x64xf32>
    %110 = arith.maximumf %108, %109 : vector<16x64xf32>
    %c0_84 = arith.constant 0 : index
    %c0_85 = arith.constant 0 : index
    %c448 = arith.constant 448 : index
    %111 = vector.load %arg7[%c0_84, %c0_85, %c448] : memref<1x16x512xf32, #tpu.memory_space<vmem>>, vector<1x16x64xf32>
    %112 = vector.shape_cast %111 : vector<1x16x64xf32> to vector<16x64xf32>
    %113 = vector.shape_cast %110 : vector<16x64xf32> to vector<1x16x64xf32>
    tpu.vector_store %arg7[%c0_84, %c0_85, %c448], %113 {strides = array<i32>} : memref<1x16x512xf32, #tpu.memory_space<vmem>>, vector<1x16x64xf32>,
    return
  }
  func.func @transform_0(%arg0: i32, %arg1: i32, %arg2: i32) -> (i32, i32, i32, i32) {
    %c0_i32 = arith.constant 0 : i32
    %c0_i32_0 = arith.constant 0 : i32
    %c0_i32_1 = arith.constant 0 : i32
    return %arg0, %arg2, %c0_i32, %c0_i32_0 : i32, i32, i32, i32
  }
  func.func @transform_1(%arg0: i32, %arg1: i32, %arg2: i32) -> (i32, i32, i32) {
    %c0_i32 = arith.constant 0 : i32
    %c0_i32_0 = arith.constant 0 : i32
    %c0_i32_1 = arith.constant 0 : i32
    return %c0_i32, %arg1, %c0_i32_0 : i32, i32, i32
  }
  func.func @transform_2(%arg0: i32, %arg1: i32, %arg2: i32) -> (i32, i32) {
    %c0_i32 = arith.constant 0 : i32
    %c0_i32_0 = arith.constant 0 : i32
    return %arg1, %c0_i32 : i32, i32
  }
  func.func @transform_3(%arg0: i32, %arg1: i32, %arg2: i32) -> (i32, i32) {
    %c0_i32 = arith.constant 0 : i32
    %c0_i32_0 = arith.constant 0 : i32
    return %arg1, %c0_i32 : i32, i32
  }
  func.func @transform_4(%arg0: i32, %arg1: i32, %arg2: i32) -> (i32, i32, i32) {
    %c0_i32 = arith.constant 0 : i32
    return %arg0, %arg1, %arg2 : i32, i32, i32
  }
}

</mosaic_0001>

<llo_original>
// kernel: a_call__.2
$region0: #{a_call__.2}
  #allocation0 [shape = 'u32[]', space=smem, size = 0x4, offset = 0x4, fixed_abs, tag = 'smem constant byte address 0x4 - core index']
  #allocation1 [shape = 'u32[144,128]{1,0:T(1,128)}', space=vmem, size = 0x12000, scoped, tag = 'internal scratch']
  %s0 = inlined_call_operand.vmem [shape: bf16[2,1,48,64], index: 0, kind: input, shape index: {}]
  %s1 = inlined_call_operand.vmem [shape: bf16[2,16,16], index: 1, kind: input, shape index: {}]
  %s2 = inlined_call_operand.vmem [shape: f32[2,1,16,1], index: 2, kind: output, shape index: {0}]
  %s3 = inlined_call_operand.vmem [shape: f32[2,1,16,1], index: 3, kind: output, shape index: {1}]
  %4 = xla_tuple %s2, %s3
  %s5 = sld [smem:[#allocation0]]
  $region49: #{a_call__.2} parent=0
    _
  %s7 = ssub.s32 1, %s5
  %s8 = scalar_select 0, %s7, %s5
  loop: start=0, step=1, limit=4
  $region2: #{a_call__.2} parent=0 // loop_pre_header
    _
  $region3: #{a_call__.2} parent=0 // loop_header
    %s10 = sphi 0, %s14
    %p11 = scmp.ge.s32.totalorder %s10, 4
    %s17 = sphi 0, %s36
    %s18 = sphi 0, %s32
    %s19 = sphi 0, %s28
    %s20 = sphi 0, %s17
    %s21 = sphi 0, %s18
    %s22 = sphi 0, %s19
    %s23 = sphi 0, %s20
    %s24 = sphi 0, %s21
    %s25 = sphi 0, %s22
    %s41 = sphi 0, %s43
    %s44 = sphi 0, %s41
    %s45 = sphi 0, %s44
    %s61 = sphi 0, %s45
    %s67 = sphi 0, %s69
    %s70 = sphi 0, %s67
    %s71 = sphi 0, %s70
    %s87 = sphi 0, %s71
    %s97 = sphi 0, %s99
    %s100 = sphi 0, %s97
    %s101 = sphi 0, %s100
    %s117 = sphi 0, %s101
    %s127 = sphi 0, %s129
    %s130 = sphi 0, %s127
    %s131 = sphi 0, %s130
    %s147 = sphi 0, %s131
  $region4: #{a_call__.2} parent=0 // loop_header_branch
    %13 = sbr.rel (%p11) target = $region8
  $region5: #{a_call__.2} parent=0 // loop_body
    %s15 = ssub.s32 %s10, 1
    %s16 = ssub.s32 %s10, 2
    %s26 = sadd.s32 1, %s19
    %p27 = scmp.ge.s32.totalorder %s26, 1
    %s28 = scalar_select %p27, 0, %s26
    %s29 = sadd.s32 1, %s18
    %s30 = scalar_select %p27, %s29, %s18
    %p31 = scmp.ge.s32.totalorder %s30, 1
    %s32 = scalar_select %p31, 0, %s30
    %s33 = sadd.s32 1, %s17
    %s34 = scalar_select %p31, %s33, %s17
    %p35 = scmp.ge.s32.totalorder %s34, 2
    %s36 = scalar_select %p35, 0, %s34
    %s37 = ssub.s32 %s17, %s36
    %s38 = ssub.s32 %s19, %s28
    %s39 = sor.u32 %s37, %s38
    %p40 = scmp.eq.s32.totalorder %s39, 0
    %s42 = sadd.s32 %s41, 1
    %s43 = scalar_select %p40, %s41, %s42
    %p46 = pneg %p40
    %p47 = scmp.eq.s32.totalorder %s10, 1
    %p48 = por %p46, %p47
    %p49 = scmp.ne.s32.totalorder %s41, %s44
    %p50 = scmp.eq.s32.totalorder %s10, 0
    %p51 = por %p49, %p50
    %p52 = scmp.ne.s32.totalorder %s41, %s44
    %p53 = scmp.eq.s32.totalorder %s15, 1
    %p54 = por %p52, %p53
    %p55 = scmp.ne.s32.totalorder %s44, %s45
    %p56 = scmp.eq.s32.totalorder %s15, 0
    %p57 = por %p55, %p56
    %p58 = scmp.ne.s32.totalorder %s44, %s45
    %p59 = scmp.eq.s32.totalorder %s16, 1
    %p60 = por %p58, %p59
    %p62 = scmp.ne.s32.totalorder %s45, %s61
    %p63 = scmp.eq.s32.totalorder %s16, 0
    %p64 = por %p62, %p63
    %s65 = ssub.s32 %s18, %s32
    %p66 = scmp.eq.s32.totalorder %s65, 0
    %s68 = sadd.s32 %s67, 1
    %s69 = scalar_select %p66, %s67, %s68
    %p72 = pneg %p66
    %p73 = scmp.eq.s32.totalorder %s10, 1
    %p74 = por %p72, %p73
    %p75 = scmp.ne.s32.totalorder %s67, %s70
    %p76 = scmp.eq.s32.totalorder %s10, 0
    %p77 = por %p75, %p76
    %p78 = scmp.ne.s32.totalorder %s67, %s70
    %p79 = scmp.eq.s32.totalorder %s15, 1
    %p80 = por %p78, %p79
    %p81 = scmp.ne.s32.totalorder %s70, %s71
    %p82 = scmp.eq.s32.totalorder %s15, 0
    %p83 = por %p81, %p82
    %p84 = scmp.ne.s32.totalorder %s70, %s71
    %p85 = scmp.eq.s32.totalorder %s16, 1
    %p86 = por %p84, %p85
    %p88 = scmp.ne.s32.totalorder %s71, %s87
    %p89 = scmp.eq.s32.totalorder %s16, 0
    %p90 = por %p88, %p89
    %s91 = ssub.s32 %s17, %s36
    %s92 = ssub.s32 %s19, %s28
    %s93 = sor.u32 %s91, %s92
    %s94 = ssub.s32 %s18, %s32
    %s95 = sor.u32 %s93, %s94
    %p96 = scmp.eq.s32.totalorder %s95, 0
    %s98 = sadd.s32 %s97, 1
    %s99 = scalar_select %p96, %s97, %s98
    %p102 = pneg %p96
    %p103 = scmp.eq.s32.totalorder %s10, 1
    %p104 = por %p102, %p103
    %p105 = scmp.ne.s32.totalorder %s97, %s100
    %p106 = scmp.eq.s32.totalorder %s10, 0
    %p107 = por %p105, %p106
    %p108 = scmp.ne.s32.totalorder %s97, %s100
    %p109 = scmp.eq.s32.totalorder %s15, 1
    %p110 = por %p108, %p109
    %p111 = scmp.ne.s32.totalorder %s100, %s101
    %p112 = scmp.eq.s32.totalorder %s15, 0
    %p113 = por %p111, %p112
    %p114 = scmp.ne.s32.totalorder %s100, %s101
    %p115 = scmp.eq.s32.totalorder %s16, 1
    %p116 = por %p114, %p115
    %p118 = scmp.ne.s32.totalorder %s101, %s117
    %p119 = scmp.eq.s32.totalorder %s16, 0
    %p120 = por %p118, %p119
    %s121 = ssub.s32 %s17, %s36
    %s122 = ssub.s32 %s19, %s28
    %s123 = sor.u32 %s121, %s122
    %s124 = ssub.s32 %s18, %s32
    %s125 = sor.u32 %s123, %s124
    %p126 = scmp.eq.s32.totalorder %s125, 0
    %s128 = sadd.s32 %s127, 1
    %s129 = scalar_select %p126, %s127, %s128
    %p132 = pneg %p126
    %p133 = scmp.eq.s32.totalorder %s10, 1
    %p134 = por %p132, %p133
    %p135 = scmp.ne.s32.totalorder %s127, %s130
    %p136 = scmp.eq.s32.totalorder %s10, 0
    %p137 = por %p135, %p136
    %p138 = scmp.ne.s32.totalorder %s127, %s130
    %p139 = scmp.eq.s32.totalorder %s15, 1
    %p140 = por %p138, %p139
    %p141 = scmp.ne.s32.totalorder %s130, %s131
    %p142 = scmp.eq.s32.totalorder %s15, 0
    %p143 = por %p141, %p142
    %p144 = scmp.ne.s32.totalorder %s130, %s131
    %p145 = scmp.eq.s32.totalorder %s16, 1
    %p146 = por %p144, %p145
    %p148 = scmp.ne.s32.totalorder %s131, %s147
    %p149 = scmp.eq.s32.totalorder %s16, 0
    %p150 = por %p148, %p149
    %p151 = scmp.le.s32.totalorder 1, %s10
    %p152 = scmp.lt.s32.totalorder %s10, 3
    %p153 = pnand %p151, %p152
    %p154 = pneg %p153
    // Predicated region
    $region9: #{a_call__.2} parent=5 // pred_check
      _
    $region10: #{a_call__.2} parent=5 // pred_check_branch
      %156 = sbr.rel (%p153) target = $region12
    $region11: #{a_call__.2} parent=5 // pred_region
      %s157 = ssub.s32 %s10, 1
      // Predicated region
      $region13: #{a_call__.2} parent=11 // pred_check
        %p158 = pneg %p83
      $region14: #{a_call__.2} parent=11 // pred_check_branch
        %160 = sbr.rel (%p158) target = $region16
      $region15: #{a_call__.2} parent=11 // pred_region
        %s161 = smul.u32 2, %s21
        %p162 = scmp.lt.s32.totalorder %s161, 1
        %s163 = scalar_select %p162, %s161, 1
        %s164 = smul.addr %s163, 4
        %s165 = scalar_lea.vmem %s1, %s164
        %s166 = smul.u32 2, %s21
      $region16: #{a_call__.2} parent=11 // pred_fallthru
        _
    $region12: #{a_call__.2} parent=5 // pred_fallthru
      _
    %p167 = scmp.lt.s32.totalorder %s10, 2
    // Predicated region
    $region17: #{a_call__.2} parent=5 // pred_check
      %p168 = pneg %p167
    $region18: #{a_call__.2} parent=5 // pred_check_branch
      %170 = sbr.rel (%p168) target = $region20
    $region19: #{a_call__.2} parent=5 // pred_region
      // Predicated region
      $region21: #{a_call__.2} parent=19 // pred_check
        %p171 = pneg %p51
      $region22: #{a_call__.2} parent=19 // pred_check_branch
        %173 = sbr.rel (%p171) target = $region24
      $region23: #{a_call__.2} parent=19 // pred_region
        %p174 = scmp.lt.s32.totalorder %s17, 1
        %s175 = scalar_select %p174, %s17, 1
        %p176 = scmp.lt.s32.totalorder %s19, 0
        %s177 = scalar_select %p176, %s19, 0
        %s178 = smul.addr %s177, 6
        %s179 = smul.addr %s175, 6
        %s180 = sadd.s32 %s178, %s179
        %s181 = smul.addr %s180, 4
        %s182 = scalar_lea.vmem %s0, %s181
      $region24: #{a_call__.2} parent=19 // pred_fallthru
        _
    $region20: #{a_call__.2} parent=5 // pred_fallthru
      _
    %p183 = scmp.le.s32.totalorder 1, %s10
    %p184 = scmp.lt.s32.totalorder %s10, 3
    %p185 = pnand %p183, %p184
    %p186 = pneg %p185
    // Predicated region
    $region25: #{a_call__.2} parent=5 // pred_check
      _
    $region26: #{a_call__.2} parent=5 // pred_check_branch
      %188 = sbr.rel (%p185) target = $region28
    $region27: #{a_call__.2} parent=5 // pred_region
      %s189 = ssub.s32 %s10, 1
      %p190 = scmp.lt.s32.totalorder %s20, 1
      %s191 = scalar_select %p190, %s20, 1
      %p192 = scmp.lt.s32.totalorder %s22, 0
      %s193 = scalar_select %p192, %s22, 0
      %s194 = smul.addr %s193, 6
      %s195 = smul.addr %s191, 6
      %s196 = sadd.s32 %s194, %s195
      %s197 = smul.addr %s196, 4
      %s198 = scalar_lea.vmem %s0, %s197
      %p199 = pneg %p57
      %p200 = pneg %p54
      %s201 = smul.u32 2, %s21
      %p202 = scmp.lt.s32.totalorder %s201, 1
      %s203 = scalar_select %p202, %s201, 1
      %s204 = smul.addr %s203, 4
      %s205 = scalar_lea.vmem %s1, %s204
      %p206 = pneg %p83
      %p207 = pneg %p80
      %p208 = pneg %p113
      %p209 = pneg %p110
      %s210 = smul.u32 2, %s21
      %p211 = scmp.lt.s32.totalorder %s20, 1
      %s212 = scalar_select %p211, %s20, 1
      %p213 = scmp.lt.s32.totalorder %s22, 0
      %s214 = scalar_select %p213, %s22, 0
      %p215 = scmp.lt.s32.totalorder %s210, 1
      %s216 = scalar_select %p215, %s210, 1
      %s217 = smul.addr %s214, 2
      %s218 = sadd.s32 %s216, %s217
      %s219 = smul.addr %s212, 2
      %s220 = sadd.s32 %s218, %s219
      %s221 = smul.addr %s220, 8
      %s222 = scalar_lea.vmem %s2, %s221
      %p223 = pneg %p143
      %p224 = pneg %p140
      %s225 = smul.u32 2, %s21
      %p226 = scmp.lt.s32.totalorder %s20, 1
      %s227 = scalar_select %p226, %s20, 1
      %p228 = scmp.lt.s32.totalorder %s22, 0
      %s229 = scalar_select %p228, %s22, 0
      %p230 = scmp.lt.s32.totalorder %s225, 1
      %s231 = scalar_select %p230, %s225, 1
      %s232 = smul.addr %s229, 2
      %s233 = sadd.s32 %s231, %s232
      %s234 = smul.addr %s227, 2
      %s235 = sadd.s32 %s233, %s234
      %s236 = smul.addr %s235, 8
      %s237 = scalar_lea.vmem %s3, %s236
      %p238 = scmp.lt.s32.totalorder %s20, 1
      %s239 = scalar_select %p238, %s20, 1
      %p240 = scmp.lt.s32.totalorder %s22, 0
      %s241 = scalar_select %p240, %s22, 0
      %s242 = smul.addr %s241, 6
      %s243 = smul.addr %s239, 6
      %s244 = sadd.s32 %s242, %s243
      %s245 = smul.addr %s244, 4
      %s246 = scalar_lea.vmem %s0, %s245
      %s247 = smul.u32 2, %s21
      %p248 = scmp.lt.s32.totalorder %s247, 1
      %s249 = scalar_select %p248, %s247, 1
      %s250 = smul.addr %s249, 4
      %s251 = scalar_lea.vmem %s1, %s250
      %s252 = smul.u32 2, %s21
      %s253 = smul.u32 2, %s21
      %p254 = scmp.lt.s32.totalorder %s20, 1
      %s255 = scalar_select %p254, %s20, 1
      %p256 = scmp.lt.s32.totalorder %s22, 0
      %s257 = scalar_select %p256, %s22, 0
      %p258 = scmp.lt.s32.totalorder %s253, 1
      %s259 = scalar_select %p258, %s253, 1
      %s260 = smul.addr %s257, 2
      %s261 = sadd.s32 %s259, %s260
      %s262 = smul.addr %s255, 2
      %s263 = sadd.s32 %s261, %s262
      %s264 = smul.addr %s263, 8
      %s265 = scalar_lea.vmem %s2, %s264
      %s266 = smul.u32 2, %s21
      %s267 = smul.u32 2, %s21
      %p268 = scmp.lt.s32.totalorder %s20, 1
      %s269 = scalar_select %p268, %s20, 1
      %p270 = scmp.lt.s32.totalorder %s22, 0
      %s271 = scalar_select %p270, %s22, 0
      %p272 = scmp.lt.s32.totalorder %s267, 1
      %s273 = scalar_select %p272, %s267, 1
      %s274 = smul.addr %s271, 2
      %s275 = sadd.s32 %s273, %s274
      %s276 = smul.addr %s269, 2
      %s277 = sadd.s32 %s275, %s276
      %s278 = smul.addr %s277, 8
      %s279 = scalar_lea.vmem %s3, %s278
      %s280 = smul.u32 2, %s21
      %v282 = vld [vmem:[%s251] sm:$0xf]
      %v283 = vld [vmem:[%s251 + $0x4] sm:$0xf]
      %v284 = vld [vmem:[%s246] sm:$0xf]
      %v285 = vld [vmem:[%s246 + $0x4] sm:$0xf]
      %v288 = vunpack.c.l.b16 %v282
      %v289 = vunpack.c.l.b16 %v283
      %v290 = vpack.c.b16 %v289, %v288
      %v293 = vunpack.c.l.b16 %v284
      %v294 = vunpack.c.l.b16 %v285
      %v295 = vpack.c.b16 %v294, %v293
      %vm297 = vcmask 130048
      %v299 = vsel %vm297, %v290, 0
      %301 = vmatprep.subr.bf16.mxu0 0
      %302 = vmatpush1.bf16.msra.mxu0 %v295
      %303 = vmatprep.subr.bf16.mxu0 0
      %304 = vmatpush1.bf16.msra.mxu0 0
      %305 = vmatprep.subr.bf16.mxu0 0
      %306 = vmatpush1.bf16.msra.mxu0 0
      %307 = vmatprep.subr.bf16.mxu0 0
      %308 = vmatpush1.bf16.msra.mxu0 0
      %309 = vmatprep.subr.bf16.mxu0 0
      %310 = vmatpush1.bf16.msra.mxu0 0
      %311 = vmatprep.subr.bf16.mxu0 0
      %312 = vmatpush1.bf16.msra.mxu0 0
      %313 = vmatprep.subr.bf16.mxu0 0
      %314 = vmatpush1.bf16.msra.mxu0 0
      %315 = vmatprep.subr.bf16.mxu0 0
      %316 = vmatpush1.bf16.msra.mxu0 0
      %317 = vmatprep.subr.bf16.mxu0 0
      %318 = vmatpush1.bf16.msra.mxu0 0
      %319 = vmatprep.subr.bf16.mxu0 0
      %320 = vmatpush1.bf16.msra.mxu0 0
      %321 = vmatprep.subr.bf16.mxu0 0
      %322 = vmatpush1.bf16.msra.mxu0 0
      %323 = vmatprep.subr.bf16.mxu0 0
      %324 = vmatpush1.bf16.msra.mxu0 0
      %325 = vmatprep.subr.bf16.mxu0 0
      %326 = vmatpush1.bf16.msra.mxu0 0
      %327 = vmatprep.subr.bf16.mxu0 0
      %328 = vmatpush1.bf16.msra.mxu0 0
      %329 = vmatprep.subr.bf16.mxu0 0
      %330 = vmatpush1.bf16.msra.mxu0 0
      %331 = vmatprep.subr.bf16.mxu0 0
      %332 = vmatpush1.bf16.msra.mxu0 0
      %333 = vmatprep.mubr.bf16.mxu0 0
      %334 = vmatmul.mubr.bf16.gmra.mrb[0].mxu0 %v299
      %v335 = vpop.f32.mrb[0].mxu0
      %v336 = vadd.f32 0.0, %v335
      %v337 = vpop.f32.mrb[0].mxu0
      %v338 = vpop.f32.mrb[0].mxu0
      %v339 = vadd.f32 0.0, %v338
      %v340 = vpop.f32.mrb[0].mxu0
      %341 = vdwg.mxu0
      %vm342 = vcmask 523264
      %v343 = vsel %vm342, %v336, 0.0
      %344 = vadd.xlane.f32.xlu0 %v343
      %v345 = vpop.xlane.xlu0 %344
      %v346 = vsel %vm342, %v339, 0.0
      %347 = vadd.xlane.f32.xlu0 %v346
      %v348 = vpop.xlane.xlu0 %347
      %v349 = vadd.f32 %v345, 0.0
      %v350 = vadd.f32 %v348, 0.0
      %v351 = vmul.f32 %v336, %v336
      %v352 = vmul.f32 %v339, %v339
      %v353 = vsel %vm342, %v351, 0.0
      %354 = vadd.xlane.f32.xlu0 %v353
      %v355 = vpop.xlane.xlu0 %354
      %v356 = vsel %vm342, %v352, 0.0
      %357 = vadd.xlane.f32.xlu0 %v356
      %v358 = vpop.xlane.xlu0 %357
      %v359 = vadd.f32 %v355, 0.0
      %v360 = vadd.f32 %v358, 0.0
      %s361 = scalar_lea.vmem %s251, 8
      %v362 = vld [vmem:[%s361] sm:$0xf]
      %v363 = vld [vmem:[%s361 + $0x4] sm:$0xf]
      %v364 = vld [vmem:[%s246 + $0x4] sm:$0xf]
      %v365 = vld [vmem:[%s246 + $0x8] sm:$0xf]
      %v368 = vunpack.c.l.b16 %v362
      %v369 = vunpack.c.l.b16 %v363
      %v370 = vpack.c.b16 %v369, %v368
      %v373 = vunpack.c.l.b16 %v364
      %v374 = vunpack.c.l.b16 %v365
      %v375 = vpack.c.b16 %v374, %v373
      %v378 = vsel %vm297, %v370, 0
      %380 = vmatprep.subr.bf16.mxu0 0
      %381 = vmatpush1.bf16.msra.mxu0 %v375
      %382 = vmatprep.subr.bf16.mxu0 0
      %383 = vmatpush1.bf16.msra.mxu0 0
      %384 = vmatprep.subr.bf16.mxu0 0
      %385 = vmatpush1.bf16.msra.mxu0 0
      %386 = vmatprep.subr.bf16.mxu0 0
      %387 = vmatpush1.bf16.msra.mxu0 0
      %388 = vmatprep.subr.bf16.mxu0 0
      %389 = vmatpush1.bf16.msra.mxu0 0
      %390 = vmatprep.subr.bf16.mxu0 0
      %391 = vmatpush1.bf16.msra.mxu0 0
      %392 = vmatprep.subr.bf16.mxu0 0
      %393 = vmatpush1.bf16.msra.mxu0 0
      %394 = vmatprep.subr.bf16.mxu0 0
      %395 = vmatpush1.bf16.msra.mxu0 0
      %396 = vmatprep.subr.bf16.mxu0 0
      %397 = vmatpush1.bf16.msra.mxu0 0
      %398 = vmatprep.subr.bf16.mxu0 0
      %399 = vmatpush1.bf16.msra.mxu0 0
      %400 = vmatprep.subr.bf16.mxu0 0
      %401 = vmatpush1.bf16.msra.mxu0 0
      %402 = vmatprep.subr.bf16.mxu0 0
      %403 = vmatpush1.bf16.msra.mxu0 0
      %404 = vmatprep.subr.bf16.mxu0 0
      %405 = vmatpush1.bf16.msra.mxu0 0
      %406 = vmatprep.subr.bf16.mxu0 0
      %407 = vmatpush1.bf16.msra.mxu0 0
      %408 = vmatprep.subr.bf16.mxu0 0
      %409 = vmatpush1.bf16.msra.mxu0 0
      %410 = vmatprep.subr.bf16.mxu0 0
      %411 = vmatpush1.bf16.msra.mxu0 0
      %412 = vmatprep.mubr.bf16.mxu0 0
      %413 = vmatmul.mubr.bf16.gmra.mrb[0].mxu0 %v378
      %v414 = vpop.f32.mrb[0].mxu0
      %v415 = vadd.f32 0.0, %v414
      %v416 = vpop.f32.mrb[0].mxu0
      %v417 = vpop.f32.mrb[0].mxu0
      %v418 = vadd.f32 0.0, %v417
      %v419 = vpop.f32.mrb[0].mxu0
      %420 = vdwg.mxu0
      %v421 = vsel %vm342, %v415, 0.0
      %422 = vadd.xlane.f32.xlu0 %v421
      %v423 = vpop.xlane.xlu0 %422
      %v424 = vsel %vm342, %v418, 0.0
      %425 = vadd.xlane.f32.xlu0 %v424
      %v426 = vpop.xlane.xlu0 %425
      %v427 = vadd.f32 %v349, %v423
      %v428 = vadd.f32 %v350, %v426
      %v429 = vmul.f32 %v415, %v415
      %v430 = vmul.f32 %v418, %v418
      %v431 = vsel %vm342, %v429, 0.0
      %432 = vadd.xlane.f32.xlu0 %v431
      %v433 = vpop.xlane.xlu0 %432
      %v434 = vsel %vm342, %v430, 0.0
      %435 = vadd.xlane.f32.xlu0 %v434
      %v436 = vpop.xlane.xlu0 %435
      %v437 = vadd.f32 %v359, %v433
      %v438 = vadd.f32 %v360, %v436
      %439 = vmatprep.subr.bf16.mxu0 0
      %440 = vmatpush1.bf16.msra.mxu0 %v375
      %441 = vmatprep.subr.bf16.mxu0 0
      %442 = vmatpush1.bf16.msra.mxu0 0
      %443 = vmatprep.subr.bf16.mxu0 0
      %444 = vmatpush1.bf16.msra.mxu0 0
      %445 = vmatprep.subr.bf16.mxu0 0
      %446 = vmatpush1.bf16.msra.mxu0 0
      %447 = vmatprep.subr.bf16.mxu0 0
      %448 = vmatpush1.bf16.msra.mxu0 0
      %449 = vmatprep.subr.bf16.mxu0 0
      %450 = vmatpush1.bf16.msra.mxu0 0
      %451 = vmatprep.subr.bf16.mxu0 0
      %452 = vmatpush1.bf16.msra.mxu0 0
      %453 = vmatprep.subr.bf16.mxu0 0
      %454 = vmatpush1.bf16.msra.mxu0 0
      %455 = vmatprep.subr.bf16.mxu0 0
      %456 = vmatpush1.bf16.msra.mxu0 0
      %457 = vmatprep.subr.bf16.mxu0 0
      %458 = vmatpush1.bf16.msra.mxu0 0
      %459 = vmatprep.subr.bf16.mxu0 0
      %460 = vmatpush1.bf16.msra.mxu0 0
      %461 = vmatprep.subr.bf16.mxu0 0
      %462 = vmatpush1.bf16.msra.mxu0 0
      %463 = vmatprep.subr.bf16.mxu0 0
      %464 = vmatpush1.bf16.msra.mxu0 0
      %465 = vmatprep.subr.bf16.mxu0 0
      %466 = vmatpush1.bf16.msra.mxu0 0
      %467 = vmatprep.subr.bf16.mxu0 0
      %468 = vmatpush1.bf16.msra.mxu0 0
      %469 = vmatprep.subr.bf16.mxu0 0
      %470 = vmatpush1.bf16.msra.mxu0 0
      %471 = vmatprep.mubr.bf16.mxu0 0
      %472 = vmatmul.mubr.bf16.gmra.mrb[0].mxu0 %v299
      %v473 = vpop.f32.mrb[0].mxu0
      %v474 = vadd.f32 0.0, %v473
      %v475 = vpop.f32.mrb[0].mxu0
      %v476 = vpop.f32.mrb[0].mxu0
      %v477 = vadd.f32 0.0, %v476
      %v478 = vpop.f32.mrb[0].mxu0
      %479 = vdwg.mxu0
      %v480 = vsel %vm342, %v474, 0.0
      %481 = vadd.xlane.f32.xlu0 %v480
      %v482 = vpop.xlane.xlu0 %481
      %v483 = vsel %vm342, %v477, 0.0
      %484 = vadd.xlane.f32.xlu0 %v483
      %v485 = vpop.xlane.xlu0 %484
      %v486 = vadd.f32 %v427, %v482
      %v487 = vadd.f32 %v428, %v485
      %v488 = vmul.f32 %v474, %v474
      %v489 = vmul.f32 %v477, %v477
      %v490 = vsel %vm342, %v488, 0.0
      %491 = vadd.xlane.f32.xlu0 %v490
      %v492 = vpop.xlane.xlu0 %491
      %v493 = vsel %vm342, %v489, 0.0
      %494 = vadd.xlane.f32.xlu0 %v493
      %v495 = vpop.xlane.xlu0 %494
      %v496 = vadd.f32 %v437, %v492
      %v497 = vadd.f32 %v438, %v495
      %v498 = vld [vmem:[%s246 + $0x8] sm:$0xf]
      %v499 = vld [vmem:[%s246 + $0xc] sm:$0xf]
      %v502 = vunpack.c.l.b16 %v498
      %v503 = vunpack.c.l.b16 %v499
      %v504 = vpack.c.b16 %v503, %v502
      %506 = vmatprep.subr.bf16.mxu0 0
      %507 = vmatpush1.bf16.msra.mxu0 %v504
      %508 = vmatprep.subr.bf16.mxu0 0
      %509 = vmatpush1.bf16.msra.mxu0 0
      %510 = vmatprep.subr.bf16.mxu0 0
      %511 = vmatpush1.bf16.msra.mxu0 0
      %512 = vmatprep.subr.bf16.mxu0 0
      %513 = vmatpush1.bf16.msra.mxu0 0
      %514 = vmatprep.subr.bf16.mxu0 0
      %515 = vmatpush1.bf16.msra.mxu0 0
      %516 = vmatprep.subr.bf16.mxu0 0
      %517 = vmatpush1.bf16.msra.mxu0 0
      %518 = vmatprep.subr.bf16.mxu0 0
      %519 = vmatpush1.bf16.msra.mxu0 0
      %520 = vmatprep.subr.bf16.mxu0 0
      %521 = vmatpush1.bf16.msra.mxu0 0
      %522 = vmatprep.subr.bf16.mxu0 0
      %523 = vmatpush1.bf16.msra.mxu0 0
      %524 = vmatprep.subr.bf16.mxu0 0
      %525 = vmatpush1.bf16.msra.mxu0 0
      %526 = vmatprep.subr.bf16.mxu0 0
      %527 = vmatpush1.bf16.msra.mxu0 0
      %528 = vmatprep.subr.bf16.mxu0 0
      %529 = vmatpush1.bf16.msra.mxu0 0
      %530 = vmatprep.subr.bf16.mxu0 0
      %531 = vmatpush1.bf16.msra.mxu0 0
      %532 = vmatprep.subr.bf16.mxu0 0
      %533 = vmatpush1.bf16.msra.mxu0 0
      %534 = vmatprep.subr.bf16.mxu0 0
      %535 = vmatpush1.bf16.msra.mxu0 0
      %536 = vmatprep.subr.bf16.mxu0 0
      %537 = vmatpush1.bf16.msra.mxu0 0
      %538 = vmatprep.mubr.bf16.mxu0 0
      %539 = vmatmul.mubr.bf16.gmra.mrb[0].mxu0 %v378
      %v540 = vpop.f32.mrb[0].mxu0
      %v541 = vadd.f32 0.0, %v540
      %v542 = vpop.f32.mrb[0].mxu0
      %v543 = vpop.f32.mrb[0].mxu0
      %v544 = vadd.f32 0.0, %v543
      %v545 = vpop.f32.mrb[0].mxu0
      %546 = vdwg.mxu0
      %v547 = vsel %vm342, %v541, 0.0
      %548 = vadd.xlane.f32.xlu0 %v547
      %v549 = vpop.xlane.xlu0 %548
      %v550 = vsel %vm342, %v544, 0.0
      %551 = vadd.xlane.f32.xlu0 %v550
      %v552 = vpop.xlane.xlu0 %551
      %v553 = vadd.f32 %v486, %v549
      %v554 = vadd.f32 %v487, %v552
      %v555 = vmul.f32 %v541, %v541
      %v556 = vmul.f32 %v544, %v544
      %v557 = vsel %vm342, %v555, 0.0
      %558 = vadd.xlane.f32.xlu0 %v557
      %v559 = vpop.xlane.xlu0 %558
      %v560 = vsel %vm342, %v556, 0.0
      %561 = vadd.xlane.f32.xlu0 %v560
      %v562 = vpop.xlane.xlu0 %561
      %v563 = vadd.f32 %v496, %v559
      %v564 = vadd.f32 %v497, %v562
      %565 = vmatprep.subr.bf16.mxu0 0
      %566 = vmatpush1.bf16.msra.mxu0 %v504
      %567 = vmatprep.subr.bf16.mxu0 0
      %568 = vmatpush1.bf16.msra.mxu0 0
      %569 = vmatprep.subr.bf16.mxu0 0
      %570 = vmatpush1.bf16.msra.mxu0 0
      %571 = vmatprep.subr.bf16.mxu0 0
      %572 = vmatpush1.bf16.msra.mxu0 0
      %573 = vmatprep.subr.bf16.mxu0 0
      %574 = vmatpush1.bf16.msra.mxu0 0
      %575 = vmatprep.subr.bf16.mxu0 0
      %576 = vmatpush1.bf16.msra.mxu0 0
      %577 = vmatprep.subr.bf16.mxu0 0
      %578 = vmatpush1.bf16.msra.mxu0 0
      %579 = vmatprep.subr.bf16.mxu0 0
      %580 = vmatpush1.bf16.msra.mxu0 0
      %581 = vmatprep.subr.bf16.mxu0 0
      %582 = vmatpush1.bf16.msra.mxu0 0
      %583 = vmatprep.subr.bf16.mxu0 0
      %584 = vmatpush1.bf16.msra.mxu0 0
      %585 = vmatprep.subr.bf16.mxu0 0
      %586 = vmatpush1.bf16.msra.mxu0 0
      %587 = vmatprep.subr.bf16.mxu0 0
      %588 = vmatpush1.bf16.msra.mxu0 0
      %589 = vmatprep.subr.bf16.mxu0 0
      %590 = vmatpush1.bf16.msra.mxu0 0
      %591 = vmatprep.subr.bf16.mxu0 0
      %592 = vmatpush1.bf16.msra.mxu0 0
      %593 = vmatprep.subr.bf16.mxu0 0
      %594 = vmatpush1.bf16.msra.mxu0 0
      %595 = vmatprep.subr.bf16.mxu0 0
      %596 = vmatpush1.bf16.msra.mxu0 0
      %597 = vmatprep.mubr.bf16.mxu0 0
      %598 = vmatmul.mubr.bf16.gmra.mrb[0].mxu0 %v299
      %v599 = vpop.f32.mrb[0].mxu0
      %v600 = vadd.f32 0.0, %v599
      %v601 = vpop.f32.mrb[0].mxu0
      %v602 = vpop.f32.mrb[0].mxu0
      %v603 = vadd.f32 0.0, %v602
      %v604 = vpop.f32.mrb[0].mxu0
      %605 = vdwg.mxu0
      %v606 = vsel %vm342, %v600, 0.0
      %607 = vadd.xlane.f32.xlu0 %v606
      %v608 = vpop.xlane.xlu0 %607
      %v609 = vsel %vm342, %v603, 0.0
      %610 = vadd.xlane.f32.xlu0 %v609
      %v611 = vpop.xlane.xlu0 %610
      %v612 = vadd.f32 %v553, %v608
      %v613 = vadd.f32 %v554, %v611
      %v614 = vmul.f32 %v600, %v600
      %v615 = vmul.f32 %v603, %v603
      %v616 = vsel %vm342, %v614, 0.0
      %617 = vadd.xlane.f32.xlu0 %v616
      %v618 = vpop.xlane.xlu0 %617
      %v619 = vsel %vm342, %v615, 0.0
      %620 = vadd.xlane.f32.xlu0 %v619
      %v621 = vpop.xlane.xlu0 %620
      %v622 = vadd.f32 %v563, %v618
      %v623 = vadd.f32 %v564, %v621
      %v624 = vld [vmem:[%s246 + $0xc] sm:$0xf]
      %v625 = vld [vmem:[%s246 + $0x10] sm:$0xf]
      %v628 = vunpack.c.l.b16 %v624
      %v629 = vunpack.c.l.b16 %v625
      %v630 = vpack.c.b16 %v629, %v628
      %632 = vmatprep.subr.bf16.mxu0 0
      %633 = vmatpush1.bf16.msra.mxu0 %v630
      %634 = vmatprep.subr.bf16.mxu0 0
      %635 = vmatpush1.bf16.msra.mxu0 0
      %636 = vmatprep.subr.bf16.mxu0 0
      %637 = vmatpush1.bf16.msra.mxu0 0
      %638 = vmatprep.subr.bf16.mxu0 0
      %639 = vmatpush1.bf16.msra.mxu0 0
      %640 = vmatprep.subr.bf16.mxu0 0
      %641 = vmatpush1.bf16.msra.mxu0 0
      %642 = vmatprep.subr.bf16.mxu0 0
      %643 = vmatpush1.bf16.msra.mxu0 0
      %644 = vmatprep.subr.bf16.mxu0 0
      %645 = vmatpush1.bf16.msra.mxu0 0
      %646 = vmatprep.subr.bf16.mxu0 0
      %647 = vmatpush1.bf16.msra.mxu0 0
      %648 = vmatprep.subr.bf16.mxu0 0
      %649 = vmatpush1.bf16.msra.mxu0 0
      %650 = vmatprep.subr.bf16.mxu0 0
      %651 = vmatpush1.bf16.msra.mxu0 0
      %652 = vmatprep.subr.bf16.mxu0 0
      %653 = vmatpush1.bf16.msra.mxu0 0
      %654 = vmatprep.subr.bf16.mxu0 0
      %655 = vmatpush1.bf16.msra.mxu0 0
      %656 = vmatprep.subr.bf16.mxu0 0
      %657 = vmatpush1.bf16.msra.mxu0 0
      %658 = vmatprep.subr.bf16.mxu0 0
      %659 = vmatpush1.bf16.msra.mxu0 0
      %660 = vmatprep.subr.bf16.mxu0 0
      %661 = vmatpush1.bf16.msra.mxu0 0
      %662 = vmatprep.subr.bf16.mxu0 0
      %663 = vmatpush1.bf16.msra.mxu0 0
      %664 = vmatprep.mubr.bf16.mxu0 0
      %665 = vmatmul.mubr.bf16.gmra.mrb[0].mxu0 %v378
      %v666 = vpop.f32.mrb[0].mxu0
      %v667 = vadd.f32 0.0, %v666
      %v668 = vpop.f32.mrb[0].mxu0
      %v669 = vpop.f32.mrb[0].mxu0
      %v670 = vadd.f32 0.0, %v669
      %v671 = vpop.f32.mrb[0].mxu0
      %672 = vdwg.mxu0
      %v673 = vsel %vm342, %v667, 0.0
      %674 = vadd.xlane.f32.xlu0 %v673
      %v675 = vpop.xlane.xlu0 %674
      %v676 = vsel %vm342, %v670, 0.0
      %677 = vadd.xlane.f32.xlu0 %v676
      %v678 = vpop.xlane.xlu0 %677
      %v679 = vadd.f32 %v612, %v675
      %v680 = vadd.f32 %v613, %v678
      %v681 = vmul.f32 %v667, %v667
      %v682 = vmul.f32 %v670, %v670
      %v683 = vsel %vm342, %v681, 0.0
      %684 = vadd.xlane.f32.xlu0 %v683
      %v685 = vpop.xlane.xlu0 %684
      %v686 = vsel %vm342, %v682, 0.0
      %687 = vadd.xlane.f32.xlu0 %v686
      %v688 = vpop.xlane.xlu0 %687
      %v689 = vadd.f32 %v622, %v685
      %v690 = vadd.f32 %v623, %v688
      %691 = vmatprep.subr.bf16.mxu0 0
      %692 = vmatpush1.bf16.msra.mxu0 %v630
      %693 = vmatprep.subr.bf16.mxu0 0
      %694 = vmatpush1.bf16.msra.mxu0 0
      %695 = vmatprep.subr.bf16.mxu0 0
      %696 = vmatpush1.bf16.msra.mxu0 0
      %697 = vmatprep.subr.bf16.mxu0 0
      %698 = vmatpush1.bf16.msra.mxu0 0
      %699 = vmatprep.subr.bf16.mxu0 0
      %700 = vmatpush1.bf16.msra.mxu0 0
      %701 = vmatprep.subr.bf16.mxu0 0
      %702 = vmatpush1.bf16.msra.mxu0 0
      %703 = vmatprep.subr.bf16.mxu0 0
      %704 = vmatpush1.bf16.msra.mxu0 0
      %705 = vmatprep.subr.bf16.mxu0 0
      %706 = vmatpush1.bf16.msra.mxu0 0
      %707 = vmatprep.subr.bf16.mxu0 0
      %708 = vmatpush1.bf16.msra.mxu0 0
      %709 = vmatprep.subr.bf16.mxu0 0
      %710 = vmatpush1.bf16.msra.mxu0 0
      %711 = vmatprep.subr.bf16.mxu0 0
      %712 = vmatpush1.bf16.msra.mxu0 0
      %713 = vmatprep.subr.bf16.mxu0 0
      %714 = vmatpush1.bf16.msra.mxu0 0
      %715 = vmatprep.subr.bf16.mxu0 0
      %716 = vmatpush1.bf16.msra.mxu0 0
      %717 = vmatprep.subr.bf16.mxu0 0
      %718 = vmatpush1.bf16.msra.mxu0 0
      %719 = vmatprep.subr.bf16.mxu0 0
      %720 = vmatpush1.bf16.msra.mxu0 0
      %721 = vmatprep.subr.bf16.mxu0 0
      %722 = vmatpush1.bf16.msra.mxu0 0
      %723 = vmatprep.mubr.bf16.mxu0 0
      %724 = vmatmul.mubr.bf16.gmra.mrb[0].mxu0 %v299
      %v725 = vpop.f32.mrb[0].mxu0
      %v726 = vadd.f32 0.0, %v725
      %v727 = vpop.f32.mrb[0].mxu0
      %v728 = vpop.f32.mrb[0].mxu0
      %v729 = vadd.f32 0.0, %v728
      %v730 = vpop.f32.mrb[0].mxu0
      %731 = vdwg.mxu0
      %v732 = vsel %vm342, %v726, 0.0
      %733 = vadd.xlane.f32.xlu0 %v732
      %v734 = vpop.xlane.xlu0 %733
      %v735 = vsel %vm342, %v729, 0.0
      %736 = vadd.xlane.f32.xlu0 %v735
      %v737 = vpop.xlane.xlu0 %736
      %v738 = vadd.f32 %v679, %v734
      %v739 = vadd.f32 %v680, %v737
      %v740 = vmul.f32 %v726, %v726
      %v741 = vmul.f32 %v729, %v729
      %v742 = vsel %vm342, %v740, 0.0
      %743 = vadd.xlane.f32.xlu0 %v742
      %v744 = vpop.xlane.xlu0 %743
      %v745 = vsel %vm342, %v741, 0.0
      %746 = vadd.xlane.f32.xlu0 %v745
      %v747 = vpop.xlane.xlu0 %746
      %v748 = vadd.f32 %v689, %v744
      %v749 = vadd.f32 %v690, %v747
      %v750 = vld [vmem:[%s246 + $0x10] sm:$0xf]
      %v751 = vld [vmem:[%s246 + $0x14] sm:$0xf]
      %v754 = vunpack.c.l.b16 %v750
      %v755 = vunpack.c.l.b16 %v751
      %v756 = vpack.c.b16 %v755, %v754
      %758 = vmatprep.subr.bf16.mxu0 0
      %759 = vmatpush1.bf16.msra.mxu0 %v756
      %760 = vmatprep.subr.bf16.mxu0 0
      %761 = vmatpush1.bf16.msra.mxu0 0
      %762 = vmatprep.subr.bf16.mxu0 0
      %763 = vmatpush1.bf16.msra.mxu0 0
      %764 = vmatprep.subr.bf16.mxu0 0
      %765 = vmatpush1.bf16.msra.mxu0 0
      %766 = vmatprep.subr.bf16.mxu0 0
      %767 = vmatpush1.bf16.msra.mxu0 0
      %768 = vmatprep.subr.bf16.mxu0 0
      %769 = vmatpush1.bf16.msra.mxu0 0
      %770 = vmatprep.subr.bf16.mxu0 0
      %771 = vmatpush1.bf16.msra.mxu0 0
      %772 = vmatprep.subr.bf16.mxu0 0
      %773 = vmatpush1.bf16.msra.mxu0 0
      %774 = vmatprep.subr.bf16.mxu0 0
      %775 = vmatpush1.bf16.msra.mxu0 0
      %776 = vmatprep.subr.bf16.mxu0 0
      %777 = vmatpush1.bf16.msra.mxu0 0
      %778 = vmatprep.subr.bf16.mxu0 0
      %779 = vmatpush1.bf16.msra.mxu0 0
      %780 = vmatprep.subr.bf16.mxu0 0
      %781 = vmatpush1.bf16.msra.mxu0 0
      %782 = vmatprep.subr.bf16.mxu0 0
      %783 = vmatpush1.bf16.msra.mxu0 0
      %784 = vmatprep.subr.bf16.mxu0 0
      %785 = vmatpush1.bf16.msra.mxu0 0
      %786 = vmatprep.subr.bf16.mxu0 0
      %787 = vmatpush1.bf16.msra.mxu0 0
      %788 = vmatprep.subr.bf16.mxu0 0
      %789 = vmatpush1.bf16.msra.mxu0 0
      %790 = vmatprep.mubr.bf16.mxu0 0
      %791 = vmatmul.mubr.bf16.gmra.mrb[0].mxu0 %v378
      %v792 = vpop.f32.mrb[0].mxu0
      %v793 = vadd.f32 0.0, %v792
      %v794 = vpop.f32.mrb[0].mxu0
      %v795 = vpop.f32.mrb[0].mxu0
      %v796 = vadd.f32 0.0, %v795
      %v797 = vpop.f32.mrb[0].mxu0
      %798 = vdwg.mxu0
      %v799 = vsel %vm342, %v793, 0.0
      %800 = vadd.xlane.f32.xlu0 %v799
      %v801 = vpop.xlane.xlu0 %800
      %v802 = vsel %vm342, %v796, 0.0
      %803 = vadd.xlane.f32.xlu0 %v802
      %v804 = vpop.xlane.xlu0 %803
      %v805 = vadd.f32 %v738, %v801
      %v806 = vadd.f32 %v739, %v804
      %v807 = vmul.f32 %v793, %v793
      %v808 = vmul.f32 %v796, %v796
      %v809 = vsel %vm342, %v807, 0.0
      %810 = vadd.xlane.f32.xlu0 %v809
      %v811 = vpop.xlane.xlu0 %810
      %v812 = vsel %vm342, %v808, 0.0
      %813 = vadd.xlane.f32.xlu0 %v812
      %v814 = vpop.xlane.xlu0 %813
      %v815 = vadd.f32 %v748, %v811
      %v816 = vadd.f32 %v749, %v814
      %vm817 = vcmask 7168
      %818 = vst.msk [vmem:[%s265] sm:$0xff] %vm817, %v805
      %819 = vst.msk [vmem:[%s265 + $0x8] sm:$0xff] %vm817, %v806
      %820 = vst.msk [vmem:[%s279] sm:$0xff] %vm817, %v815
      %821 = vst.msk [vmem:[%s279 + $0x8] sm:$0xff] %vm817, %v816
      %s822 = smul.u32 2, %s21
      %p823 = scmp.lt.s32.totalorder %s20, 1
      %s824 = scalar_select %p823, %s20, 1
      %p825 = scmp.lt.s32.totalorder %s22, 0
      %s826 = scalar_select %p825, %s22, 0
      %p827 = scmp.lt.s32.totalorder %s822, 1
      %s828 = scalar_select %p827, %s822, 1
      %s829 = smul.addr %s826, 2
      %s830 = sadd.s32 %s828, %s829
      %s831 = smul.addr %s824, 2
      %s832 = sadd.s32 %s830, %s831
      %s833 = smul.addr %s832, 8
      %s834 = scalar_lea.vmem %s2, %s833
      %s835 = smul.u32 2, %s21
      %p836 = scmp.lt.s32.totalorder %s20, 1
      %s837 = scalar_select %p836, %s20, 1
      %p838 = scmp.lt.s32.totalorder %s22, 0
      %s839 = scalar_select %p838, %s22, 0
      %p840 = scmp.lt.s32.totalorder %s835, 1
      %s841 = scalar_select %p840, %s835, 1
      %s842 = smul.addr %s839, 2
      %s843 = sadd.s32 %s841, %s842
      %s844 = smul.addr %s837, 2
      %s845 = sadd.s32 %s843, %s844
      %s846 = smul.addr %s845, 8
      %s847 = scalar_lea.vmem %s3, %s846
      // Predicated region
      $region29: #{a_call__.2} parent=27 // pred_check
        %p848 = pneg %p110
      $region30: #{a_call__.2} parent=27 // pred_check_branch
        %850 = sbr.rel (%p848) target = $region32
      $region31: #{a_call__.2} parent=27 // pred_region
        %s851 = smul.u32 2, %s21
      $region32: #{a_call__.2} parent=27 // pred_fallthru
        _
      // Predicated region
      $region33: #{a_call__.2} parent=27 // pred_check
        %p852 = pneg %p140
      $region34: #{a_call__.2} parent=27 // pred_check_branch
        %854 = sbr.rel (%p852) target = $region36
      $region35: #{a_call__.2} parent=27 // pred_region
        %s855 = smul.u32 2, %s21
      $region36: #{a_call__.2} parent=27 // pred_fallthru
        _
    $region28: #{a_call__.2} parent=5 // pred_fallthru
      _
    %p856 = scmp.le.s32.totalorder 2, %s10
    // Predicated region
    $region37: #{a_call__.2} parent=5 // pred_check
      %p857 = pneg %p856
    $region38: #{a_call__.2} parent=5 // pred_check_branch
      %859 = sbr.rel (%p857) target = $region40
    $region39: #{a_call__.2} parent=5 // pred_region
      %s860 = ssub.s32 %s10, 2
      // Predicated region
      $region41: #{a_call__.2} parent=39 // pred_check
        %p861 = pneg %p116
      $region42: #{a_call__.2} parent=39 // pred_check_branch
        %863 = sbr.rel (%p861) target = $region44
      $region43: #{a_call__.2} parent=39 // pred_region
        %s864 = smul.u32 2, %s24
        %p865 = scmp.lt.s32.totalorder %s23, 1
        %s866 = scalar_select %p865, %s23, 1
        %p867 = scmp.lt.s32.totalorder %s25, 0
        %s868 = scalar_select %p867, %s25, 0
        %p869 = scmp.lt.s32.totalorder %s864, 1
        %s870 = scalar_select %p869, %s864, 1
        %s871 = smul.addr %s868, 2
        %s872 = sadd.s32 %s870, %s871
        %s873 = smul.addr %s866, 2
        %s874 = sadd.s32 %s872, %s873
        %s875 = smul.addr %s874, 8
        %s876 = scalar_lea.vmem %s2, %s875
      $region44: #{a_call__.2} parent=39 // pred_fallthru
        _
      // Predicated region
      $region45: #{a_call__.2} parent=39 // pred_check
        %p877 = pneg %p146
      $region46: #{a_call__.2} parent=39 // pred_check_branch
        %879 = sbr.rel (%p877) target = $region48
      $region47: #{a_call__.2} parent=39 // pred_region
        %s880 = smul.u32 2, %s24
        %p881 = scmp.lt.s32.totalorder %s23, 1
        %s882 = scalar_select %p881, %s23, 1
        %p883 = scmp.lt.s32.totalorder %s25, 0
        %s884 = scalar_select %p883, %s25, 0
        %p885 = scmp.lt.s32.totalorder %s880, 1
        %s886 = scalar_select %p885, %s880, 1
        %s887 = smul.addr %s884, 2
        %s888 = sadd.s32 %s886, %s887
        %s889 = smul.addr %s882, 2
        %s890 = sadd.s32 %s888, %s889
        %s891 = smul.addr %s890, 8
        %s892 = scalar_lea.vmem %s3, %s891
      $region48: #{a_call__.2} parent=39 // pred_fallthru
        _
    $region40: #{a_call__.2} parent=5 // pred_fallthru
      _
  $region6: #{a_call__.2} parent=0 // loop_footer
    %s14 = sadd.s32 1, %s10
  $region7: #{a_call__.2} parent=0 // loop_footer_branch
    %9 = sbr.rel target = $region3
  $region8: #{a_call__.2} parent=0 // loop_exit
    _

// kernel: a_call__.3
$region0: #{a_call__.3}
  #allocation0 [shape = 'u32[]', space=smem, size = 0x4, offset = 0x4, fixed_abs, tag = 'smem constant byte address 0x4 - core index']
  #allocation1 [shape = 'u32[144,128]{1,0:T(1,128)}', space=vmem, size = 0x12000, scoped, tag = 'internal scratch']
  %s0 = inlined_call_operand.vmem [shape: bf16[2,1,48,64], index: 0, kind: input, shape index: {}]
  %s1 = inlined_call_operand.vmem [shape: bf16[2,16,16], index: 1, kind: input, shape index: {}]
  %s2 = inlined_call_operand.vmem [shape: f32[16,1], index: 2, kind: input, shape index: {}]
  %s3 = inlined_call_operand.vmem [shape: f32[16,1], index: 3, kind: input, shape index: {}]
  %s4 = inlined_call_operand.vmem [shape: f32[2,16,512], index: 4, kind: output, shape index: {}]
  %s5 = sld [smem:[#allocation0]]
  $region49: #{a_call__.3} parent=0
    _
  %s7 = ssub.s32 1, %s5
  %s8 = scalar_select 0, %s7, %s5
  loop: start=0, step=1, limit=4
  $region2: #{a_call__.3} parent=0 // loop_pre_header
    _
  $region3: #{a_call__.3} parent=0 // loop_header
    %s10 = sphi 0, %s14
    %p11 = scmp.ge.s32.totalorder %s10, 4
    %s17 = sphi 0, %s36
    %s18 = sphi 0, %s32
    %s19 = sphi 0, %s28
    %s20 = sphi 0, %s17
    %s21 = sphi 0, %s18
    %s22 = sphi 0, %s19
    %s23 = sphi 0, %s20
    %s24 = sphi 0, %s21
    %s25 = sphi 0, %s22
    %s41 = sphi 0, %s43
    %s44 = sphi 0, %s41
    %s45 = sphi 0, %s44
    %s61 = sphi 0, %s45
    %s67 = sphi 0, %s69
    %s70 = sphi 0, %s67
    %s71 = sphi 0, %s70
    %s87 = sphi 0, %s71
    %s93 = sphi 0, %s95
    %s96 = sphi 0, %s93
    %s97 = sphi 0, %s96
    %s113 = sphi 0, %s97
    %s119 = sphi 0, %s121
    %s122 = sphi 0, %s119
    %s123 = sphi 0, %s122
    %s139 = sphi 0, %s123
    %s149 = sphi 0, %s151
    %s152 = sphi 0, %s149
    %s153 = sphi 0, %s152
    %s169 = sphi 0, %s153
  $region4: #{a_call__.3} parent=0 // loop_header_branch
    %13 = sbr.rel (%p11) target = $region8
  $region5: #{a_call__.3} parent=0 // loop_body
    %s15 = ssub.s32 %s10, 1
    %s16 = ssub.s32 %s10, 2
    %s26 = sadd.s32 1, %s19
    %p27 = scmp.ge.s32.totalorder %s26, 1
    %s28 = scalar_select %p27, 0, %s26
    %s29 = sadd.s32 1, %s18
    %s30 = scalar_select %p27, %s29, %s18
    %p31 = scmp.ge.s32.totalorder %s30, 1
    %s32 = scalar_select %p31, 0, %s30
    %s33 = sadd.s32 1, %s17
    %s34 = scalar_select %p31, %s33, %s17
    %p35 = scmp.ge.s32.totalorder %s34, 2
    %s36 = scalar_select %p35, 0, %s34
    %s37 = ssub.s32 %s17, %s36
    %s38 = ssub.s32 %s19, %s28
    %s39 = sor.u32 %s37, %s38
    %p40 = scmp.eq.s32.totalorder %s39, 0
    %s42 = sadd.s32 %s41, 1
    %s43 = scalar_select %p40, %s41, %s42
    %p46 = pneg %p40
    %p47 = scmp.eq.s32.totalorder %s10, 1
    %p48 = por %p46, %p47
    %p49 = scmp.ne.s32.totalorder %s41, %s44
    %p50 = scmp.eq.s32.totalorder %s10, 0
    %p51 = por %p49, %p50
    %p52 = scmp.ne.s32.totalorder %s41, %s44
    %p53 = scmp.eq.s32.totalorder %s15, 1
    %p54 = por %p52, %p53
    %p55 = scmp.ne.s32.totalorder %s44, %s45
    %p56 = scmp.eq.s32.totalorder %s15, 0
    %p57 = por %p55, %p56
    %p58 = scmp.ne.s32.totalorder %s44, %s45
    %p59 = scmp.eq.s32.totalorder %s16, 1
    %p60 = por %p58, %p59
    %p62 = scmp.ne.s32.totalorder %s45, %s61
    %p63 = scmp.eq.s32.totalorder %s16, 0
    %p64 = por %p62, %p63
    %s65 = ssub.s32 %s18, %s32
    %p66 = scmp.eq.s32.totalorder %s65, 0
    %s68 = sadd.s32 %s67, 1
    %s69 = scalar_select %p66, %s67, %s68
    %p72 = pneg %p66
    %p73 = scmp.eq.s32.totalorder %s10, 1
    %p74 = por %p72, %p73
    %p75 = scmp.ne.s32.totalorder %s67, %s70
    %p76 = scmp.eq.s32.totalorder %s10, 0
    %p77 = por %p75, %p76
    %p78 = scmp.ne.s32.totalorder %s67, %s70
    %p79 = scmp.eq.s32.totalorder %s15, 1
    %p80 = por %p78, %p79
    %p81 = scmp.ne.s32.totalorder %s70, %s71
    %p82 = scmp.eq.s32.totalorder %s15, 0
    %p83 = por %p81, %p82
    %p84 = scmp.ne.s32.totalorder %s70, %s71
    %p85 = scmp.eq.s32.totalorder %s16, 1
    %p86 = por %p84, %p85
    %p88 = scmp.ne.s32.totalorder %s71, %s87
    %p89 = scmp.eq.s32.totalorder %s16, 0
    %p90 = por %p88, %p89
    %s91 = ssub.s32 %s18, %s32
    %p92 = scmp.eq.s32.totalorder %s91, 0
    %s94 = sadd.s32 %s93, 1
    %s95 = scalar_select %p92, %s93, %s94
    %p98 = pneg %p92
    %p99 = scmp.eq.s32.totalorder %s10, 1
    %p100 = por %p98, %p99
    %p101 = scmp.ne.s32.totalorder %s93, %s96
    %p102 = scmp.eq.s32.totalorder %s10, 0
    %p103 = por %p101, %p102
    %p104 = scmp.ne.s32.totalorder %s93, %s96
    %p105 = scmp.eq.s32.totalorder %s15, 1
    %p106 = por %p104, %p105
    %p107 = scmp.ne.s32.totalorder %s96, %s97
    %p108 = scmp.eq.s32.totalorder %s15, 0
    %p109 = por %p107, %p108
    %p110 = scmp.ne.s32.totalorder %s96, %s97
    %p111 = scmp.eq.s32.totalorder %s16, 1
    %p112 = por %p110, %p111
    %p114 = scmp.ne.s32.totalorder %s97, %s113
    %p115 = scmp.eq.s32.totalorder %s16, 0
    %p116 = por %p114, %p115
    %s117 = ssub.s32 %s18, %s32
    %p118 = scmp.eq.s32.totalorder %s117, 0
    %s120 = sadd.s32 %s119, 1
    %s121 = scalar_select %p118, %s119, %s120
    %p124 = pneg %p118
    %p125 = scmp.eq.s32.totalorder %s10, 1
    %p126 = por %p124, %p125
    %p127 = scmp.ne.s32.totalorder %s119, %s122
    %p128 = scmp.eq.s32.totalorder %s10, 0
    %p129 = por %p127, %p128
    %p130 = scmp.ne.s32.totalorder %s119, %s122
    %p131 = scmp.eq.s32.totalorder %s15, 1
    %p132 = por %p130, %p131
    %p133 = scmp.ne.s32.totalorder %s122, %s123
    %p134 = scmp.eq.s32.totalorder %s15, 0
    %p135 = por %p133, %p134
    %p136 = scmp.ne.s32.totalorder %s122, %s123
    %p137 = scmp.eq.s32.totalorder %s16, 1
    %p138 = por %p136, %p137
    %p140 = scmp.ne.s32.totalorder %s123, %s139
    %p141 = scmp.eq.s32.totalorder %s16, 0
    %p142 = por %p140, %p141
    %s143 = ssub.s32 %s17, %s36
    %s144 = ssub.s32 %s18, %s32
    %s145 = sor.u32 %s143, %s144
    %s146 = ssub.s32 %s19, %s28
    %s147 = sor.u32 %s145, %s146
    %p148 = scmp.eq.s32.totalorder %s147, 0
    %s150 = sadd.s32 %s149, 1
    %s151 = scalar_select %p148, %s149, %s150
    %p154 = pneg %p148
    %p155 = scmp.eq.s32.totalorder %s10, 1
    %p156 = por %p154, %p155
    %p157 = scmp.ne.s32.totalorder %s149, %s152
    %p158 = scmp.eq.s32.totalorder %s10, 0
    %p159 = por %p157, %p158
    %p160 = scmp.ne.s32.totalorder %s149, %s152
    %p161 = scmp.eq.s32.totalorder %s15, 1
    %p162 = por %p160, %p161
    %p163 = scmp.ne.s32.totalorder %s152, %s153
    %p164 = scmp.eq.s32.totalorder %s15, 0
    %p165 = por %p163, %p164
    %p166 = scmp.ne.s32.totalorder %s152, %s153
    %p167 = scmp.eq.s32.totalorder %s16, 1
    %p168 = por %p166, %p167
    %p170 = scmp.ne.s32.totalorder %s153, %s169
    %p171 = scmp.eq.s32.totalorder %s16, 0
    %p172 = por %p170, %p171
    %p173 = scmp.le.s32.totalorder 1, %s10
    %p174 = scmp.lt.s32.totalorder %s10, 3
    %p175 = pnand %p173, %p174
    %p176 = pneg %p175
    // Predicated region
    $region9: #{a_call__.3} parent=5 // pred_check
      _
    $region10: #{a_call__.3} parent=5 // pred_check_branch
      %178 = sbr.rel (%p175) target = $region12
    $region11: #{a_call__.3} parent=5 // pred_region
      %s179 = ssub.s32 %s10, 1
      // Predicated region
      $region13: #{a_call__.3} parent=11 // pred_check
        %p180 = pneg %p83
      $region14: #{a_call__.3} parent=11 // pred_check_branch
        %182 = sbr.rel (%p180) target = $region16
      $region15: #{a_call__.3} parent=11 // pred_region
        %s183 = smul.u32 2, %s21
        %p184 = scmp.lt.s32.totalorder %s183, 1
        %s185 = scalar_select %p184, %s183, 1
        %s186 = smul.addr %s185, 4
        %s187 = scalar_lea.vmem %s1, %s186
        %s188 = smul.u32 2, %s21
      $region16: #{a_call__.3} parent=11 // pred_fallthru
        _
      // Predicated region
      $region17: #{a_call__.3} parent=11 // pred_check
        %p189 = pneg %p109
      $region18: #{a_call__.3} parent=11 // pred_check_branch
        %191 = sbr.rel (%p189) target = $region20
      $region19: #{a_call__.3} parent=11 // pred_region
        %s192 = smul.u32 2, %s21
        %p193 = scmp.lt.s32.totalorder %s192, 1
        %s194 = scalar_select %p193, %s192, 1
        %s195 = smul.addr %s194, 8
        %s196 = scalar_lea.vmem %s2, %s195
        %s197 = smul.u32 2, %s21
      $region20: #{a_call__.3} parent=11 // pred_fallthru
        _
      // Predicated region
      $region21: #{a_call__.3} parent=11 // pred_check
        %p198 = pneg %p135
      $region22: #{a_call__.3} parent=11 // pred_check_branch
        %200 = sbr.rel (%p198) target = $region24
      $region23: #{a_call__.3} parent=11 // pred_region
        %s201 = smul.u32 2, %s21
        %p202 = scmp.lt.s32.totalorder %s201, 1
        %s203 = scalar_select %p202, %s201, 1
        %s204 = smul.addr %s203, 8
        %s205 = scalar_lea.vmem %s3, %s204
        %s206 = smul.u32 2, %s21
      $region24: #{a_call__.3} parent=11 // pred_fallthru
        _
    $region12: #{a_call__.3} parent=5 // pred_fallthru
      _
    %p207 = scmp.lt.s32.totalorder %s10, 2
    // Predicated region
    $region25: #{a_call__.3} parent=5 // pred_check
      %p208 = pneg %p207
    $region26: #{a_call__.3} parent=5 // pred_check_branch
      %210 = sbr.rel (%p208) target = $region28
    $region27: #{a_call__.3} parent=5 // pred_region
      // Predicated region
      $region29: #{a_call__.3} parent=27 // pred_check
        %p211 = pneg %p51
      $region30: #{a_call__.3} parent=27 // pred_check_branch
        %213 = sbr.rel (%p211) target = $region32
      $region31: #{a_call__.3} parent=27 // pred_region
        %p214 = scmp.lt.s32.totalorder %s17, 1
        %s215 = scalar_select %p214, %s17, 1
        %p216 = scmp.lt.s32.totalorder %s19, 0
        %s217 = scalar_select %p216, %s19, 0
        %s218 = smul.addr %s217, 6
        %s219 = smul.addr %s215, 6
        %s220 = sadd.s32 %s218, %s219
        %s221 = smul.addr %s220, 4
        %s222 = scalar_lea.vmem %s0, %s221
      $region32: #{a_call__.3} parent=27 // pred_fallthru
        _
    $region28: #{a_call__.3} parent=5 // pred_fallthru
      _
    %p223 = scmp.le.s32.totalorder 1, %s10
    %p224 = scmp.lt.s32.totalorder %s10, 3
    %p225 = pnand %p223, %p224
    %p226 = pneg %p225
    // Predicated region
    $region33: #{a_call__.3} parent=5 // pred_check
      _
    $region34: #{a_call__.3} parent=5 // pred_check_branch
      %228 = sbr.rel (%p225) target = $region36
    $region35: #{a_call__.3} parent=5 // pred_region
      %s229 = ssub.s32 %s10, 1
      %p230 = scmp.lt.s32.totalorder %s20, 1
      %s231 = scalar_select %p230, %s20, 1
      %p232 = scmp.lt.s32.totalorder %s22, 0
      %s233 = scalar_select %p232, %s22, 0
      %s234 = smul.addr %s233, 6
      %s235 = smul.addr %s231, 6
      %s236 = sadd.s32 %s234, %s235
      %s237 = smul.addr %s236, 4
      %s238 = scalar_lea.vmem %s0, %s237
      %p239 = pneg %p57
      %p240 = pneg %p54
      %s241 = smul.u32 2, %s21
      %p242 = scmp.lt.s32.totalorder %s241, 1
      %s243 = scalar_select %p242, %s241, 1
      %s244 = smul.addr %s243, 4
      %s245 = scalar_lea.vmem %s1, %s244
      %p246 = pneg %p83
      %p247 = pneg %p80
      %s248 = smul.u32 2, %s21
      %p249 = scmp.lt.s32.totalorder %s248, 1
      %s250 = scalar_select %p249, %s248, 1
      %s251 = smul.addr %s250, 8
      %s252 = scalar_lea.vmem %s2, %s251
      %p253 = pneg %p109
      %p254 = pneg %p106
      %s255 = smul.u32 2, %s21
      %p256 = scmp.lt.s32.totalorder %s255, 1
      %s257 = scalar_select %p256, %s255, 1
      %s258 = smul.addr %s257, 8
      %s259 = scalar_lea.vmem %s3, %s258
      %p260 = pneg %p135
      %p261 = pneg %p132
      %p262 = pneg %p165
      %p263 = pneg %p162
      %s264 = smul.u32 2, %s21
      %s265 = smul.u32 4, %s22
      %p266 = scmp.lt.s32.totalorder %s20, 1
      %s267 = scalar_select %p266, %s20, 1
      %p268 = scmp.lt.s32.totalorder %s264, 1
      %s269 = scalar_select %p268, %s264, 1
      %p270 = scmp.lt.s32.totalorder %s265, 3
      %s271 = scalar_select %p270, %s265, 3
      %s272 = smul.addr %s269, 4
      %s273 = sadd.s32 %s271, %s272
      %s274 = smul.addr %s267, 8
      %s275 = sadd.s32 %s273, %s274
      %s276 = smul.addr %s275, 8
      %s277 = scalar_lea.vmem %s4, %s276
      %p278 = scmp.lt.s32.totalorder %s20, 1
      %s279 = scalar_select %p278, %s20, 1
      %p280 = scmp.lt.s32.totalorder %s22, 0
      %s281 = scalar_select %p280, %s22, 0
      %s282 = smul.addr %s281, 6
      %s283 = smul.addr %s279, 6
      %s284 = sadd.s32 %s282, %s283
      %s285 = smul.addr %s284, 4
      %s286 = scalar_lea.vmem %s0, %s285
      %s287 = smul.u32 2, %s21
      %p288 = scmp.lt.s32.totalorder %s287, 1
      %s289 = scalar_select %p288, %s287, 1
      %s290 = smul.addr %s289, 4
      %s291 = scalar_lea.vmem %s1, %s290
      %s292 = smul.u32 2, %s21
      %s293 = smul.u32 2, %s21
      %p294 = scmp.lt.s32.totalorder %s293, 1
      %s295 = scalar_select %p294, %s293, 1
      %s296 = smul.addr %s295, 8
      %s297 = scalar_lea.vmem %s2, %s296
      %s298 = smul.u32 2, %s21
      %s299 = smul.u32 2, %s21
      %p300 = scmp.lt.s32.totalorder %s299, 1
      %s301 = scalar_select %p300, %s299, 1
      %s302 = smul.addr %s301, 8
      %s303 = scalar_lea.vmem %s3, %s302
      %s304 = smul.u32 2, %s21
      %s305 = smul.u32 2, %s21
      %s306 = smul.u32 4, %s22
      %p307 = scmp.lt.s32.totalorder %s20, 1
      %s308 = scalar_select %p307, %s20, 1
      %p309 = scmp.lt.s32.totalorder %s305, 1
      %s310 = scalar_select %p309, %s305, 1
      %p311 = scmp.lt.s32.totalorder %s306, 3
      %s312 = scalar_select %p311, %s306, 3
      %s313 = smul.addr %s310, 4
      %s314 = sadd.s32 %s312, %s313
      %s315 = smul.addr %s308, 8
      %s316 = sadd.s32 %s314, %s315
      %s317 = smul.addr %s316, 8
      %s318 = scalar_lea.vmem %s4, %s317
      %s319 = smul.u32 2, %s21
      %s320 = smul.u32 4, %s22
      %v322 = vld [vmem:[%s297] sm:$0xff]
      %v323 = vld [vmem:[%s297 + $0x8] sm:$0xff]
      %v324 = vld [vmem:[%s303] sm:$0xff]
      %v325 = vld [vmem:[%s303 + $0x8] sm:$0xff]
      %v326 = vld [vmem:[%s291] sm:$0xf]
      %v327 = vld [vmem:[%s291 + $0x4] sm:$0xf]
      %v328 = vld [vmem:[%s286] sm:$0xf]
      %v329 = vld [vmem:[%s286 + $0x4] sm:$0xf]
      %v332 = vunpack.c.l.b16 %v326
      %v333 = vunpack.c.l.b16 %v327
      %v334 = vpack.c.b16 %v333, %v332
      %v337 = vunpack.c.l.b16 %v328
      %v338 = vunpack.c.l.b16 %v329
      %v339 = vpack.c.b16 %v338, %v337
      %vm341 = vcmask 130048
      %v343 = vsel %vm341, %v334, 0
      %345 = vmatprep.subr.bf16.mxu0 0
      %346 = vmatpush1.bf16.msra.mxu0 %v339
      %347 = vmatprep.subr.bf16.mxu0 0
      %348 = vmatpush1.bf16.msra.mxu0 0
      %349 = vmatprep.subr.bf16.mxu0 0
      %350 = vmatpush1.bf16.msra.mxu0 0
      %351 = vmatprep.subr.bf16.mxu0 0
      %352 = vmatpush1.bf16.msra.mxu0 0
      %353 = vmatprep.subr.bf16.mxu0 0
      %354 = vmatpush1.bf16.msra.mxu0 0
      %355 = vmatprep.subr.bf16.mxu0 0
      %356 = vmatpush1.bf16.msra.mxu0 0
      %357 = vmatprep.subr.bf16.mxu0 0
      %358 = vmatpush1.bf16.msra.mxu0 0
      %359 = vmatprep.subr.bf16.mxu0 0
      %360 = vmatpush1.bf16.msra.mxu0 0
      %361 = vmatprep.subr.bf16.mxu0 0
      %362 = vmatpush1.bf16.msra.mxu0 0
      %363 = vmatprep.subr.bf16.mxu0 0
      %364 = vmatpush1.bf16.msra.mxu0 0
      %365 = vmatprep.subr.bf16.mxu0 0
      %366 = vmatpush1.bf16.msra.mxu0 0
      %367 = vmatprep.subr.bf16.mxu0 0
      %368 = vmatpush1.bf16.msra.mxu0 0
      %369 = vmatprep.subr.bf16.mxu0 0
      %370 = vmatpush1.bf16.msra.mxu0 0
      %371 = vmatprep.subr.bf16.mxu0 0
      %372 = vmatpush1.bf16.msra.mxu0 0
      %373 = vmatprep.subr.bf16.mxu0 0
      %374 = vmatpush1.bf16.msra.mxu0 0
      %375 = vmatprep.subr.bf16.mxu0 0
      %376 = vmatpush1.bf16.msra.mxu0 0
      %377 = vmatprep.mubr.bf16.mxu0 0
      %378 = vmatmul.mubr.bf16.gmra.mrb[0].mxu0 %v343
      %v379 = vpop.f32.mrb[0].mxu0
      %v380 = vadd.f32 0.0, %v379
      %v381 = vpop.f32.mrb[0].mxu0
      %v382 = vpop.f32.mrb[0].mxu0
      %v383 = vadd.f32 0.0, %v382
      %v384 = vpop.f32.mrb[0].mxu0
      %385 = vdwg.mxu0
      %387 = vset.pattern.permute.xlu0 0
      %388 = vperm.xlu0 %387, %v322
      %v389 = vpop.permute.xlu0 %388
      %392 = vset.pattern.permute.xlu0 0
      %393 = vperm.xlu0 %392, %v323
      %v394 = vpop.permute.xlu0 %393
      %v396 = vmul.f32 %v380, %v389
      %v397 = vmul.f32 %v383, %v394
      %399 = vset.pattern.permute.xlu0 0
      %400 = vperm.xlu0 %399, %v324
      %v401 = vpop.permute.xlu0 %400
      %404 = vset.pattern.permute.xlu0 0
      %405 = vperm.xlu0 %404, %v325
      %v406 = vpop.permute.xlu0 %405
      %v408 = vadd.f32 %v396, %v401
      %v409 = vadd.f32 %v397, %v406
      %v410 = vmax.f32 %v408, 0.0
      %v411 = vmax.f32 %v409, 0.0
      %vm412 = vcmask 523264
      %413 = vst.msk [vmem:[%s318] sm:$0xff] %vm412, %v410
      %414 = vst.msk [vmem:[%s318 + $0x20] sm:$0xff] %vm412, %v411
      %s415 = scalar_lea.vmem %s291, 8
      %v416 = vld [vmem:[%s415] sm:$0xf]
      %v417 = vld [vmem:[%s415 + $0x4] sm:$0xf]
      %v418 = vld [vmem:[%s286 + $0x4] sm:$0xf]
      %v419 = vld [vmem:[%s286 + $0x8] sm:$0xf]
      %v422 = vunpack.c.l.b16 %v416
      %v423 = vunpack.c.l.b16 %v417
      %v424 = vpack.c.b16 %v423, %v422
      %v427 = vunpack.c.l.b16 %v418
      %v428 = vunpack.c.l.b16 %v419
      %v429 = vpack.c.b16 %v428, %v427
      %v432 = vsel %vm341, %v424, 0
      %434 = vmatprep.subr.bf16.mxu0 0
      %435 = vmatpush1.bf16.msra.mxu0 %v429
      %436 = vmatprep.subr.bf16.mxu0 0
      %437 = vmatpush1.bf16.msra.mxu0 0
      %438 = vmatprep.subr.bf16.mxu0 0
      %439 = vmatpush1.bf16.msra.mxu0 0
      %440 = vmatprep.subr.bf16.mxu0 0
      %441 = vmatpush1.bf16.msra.mxu0 0
      %442 = vmatprep.subr.bf16.mxu0 0
      %443 = vmatpush1.bf16.msra.mxu0 0
      %444 = vmatprep.subr.bf16.mxu0 0
      %445 = vmatpush1.bf16.msra.mxu0 0
      %446 = vmatprep.subr.bf16.mxu0 0
      %447 = vmatpush1.bf16.msra.mxu0 0
      %448 = vmatprep.subr.bf16.mxu0 0
      %449 = vmatpush1.bf16.msra.mxu0 0
      %450 = vmatprep.subr.bf16.mxu0 0
      %451 = vmatpush1.bf16.msra.mxu0 0
      %452 = vmatprep.subr.bf16.mxu0 0
      %453 = vmatpush1.bf16.msra.mxu0 0
      %454 = vmatprep.subr.bf16.mxu0 0
      %455 = vmatpush1.bf16.msra.mxu0 0
      %456 = vmatprep.subr.bf16.mxu0 0
      %457 = vmatpush1.bf16.msra.mxu0 0
      %458 = vmatprep.subr.bf16.mxu0 0
      %459 = vmatpush1.bf16.msra.mxu0 0
      %460 = vmatprep.subr.bf16.mxu0 0
      %461 = vmatpush1.bf16.msra.mxu0 0
      %462 = vmatprep.subr.bf16.mxu0 0
      %463 = vmatpush1.bf16.msra.mxu0 0
      %464 = vmatprep.subr.bf16.mxu0 0
      %465 = vmatpush1.bf16.msra.mxu0 0
      %466 = vmatprep.mubr.bf16.mxu0 0
      %467 = vmatmul.mubr.bf16.gmra.mrb[0].mxu0 %v432
      %v468 = vpop.f32.mrb[0].mxu0
      %v469 = vadd.f32 0.0, %v468
      %v470 = vpop.f32.mrb[0].mxu0
      %v471 = vpop.f32.mrb[0].mxu0
      %v472 = vadd.f32 0.0, %v471
      %v473 = vpop.f32.mrb[0].mxu0
      %474 = vdwg.mxu0
      %v475 = vmul.f32 %v469, %v389
      %v476 = vmul.f32 %v472, %v394
      %v477 = vadd.f32 %v475, %v401
      %v478 = vadd.f32 %v476, %v406
      %v479 = vmax.f32 %v477, 0.0
      %v480 = vmax.f32 %v478, 0.0
      %483 = vrot.lane.b32.xlu0 %v479, 64
      %v484 = vpop.permute.xlu0 %483
      %485 = vrot.lane.b32.xlu0 %v480, 64
      %v486 = vpop.permute.xlu0 %485
      %vm489 = vcmask 1048064
      %490 = vst.msk [vmem:[%s318] sm:$0xff] %vm489, %v484
      %491 = vst.msk [vmem:[%s318 + $0x20] sm:$0xff] %vm489, %v486
      %v492 = vld [vmem:[%s291] sm:$0xf]
      %v493 = vld [vmem:[%s291 + $0x4] sm:$0xf]
      %v494 = vld [vmem:[%s286 + $0x4] sm:$0xf]
      %v495 = vld [vmem:[%s286 + $0x8] sm:$0xf]
      %v498 = vunpack.c.l.b16 %v492
      %v499 = vunpack.c.l.b16 %v493
      %v500 = vpack.c.b16 %v499, %v498
      %v503 = vunpack.c.l.b16 %v494
      %v504 = vunpack.c.l.b16 %v495
      %v505 = vpack.c.b16 %v504, %v503
      %v508 = vsel %vm341, %v500, 0
      %510 = vmatprep.subr.bf16.mxu0 0
      %511 = vmatpush1.bf16.msra.mxu0 %v505
      %512 = vmatprep.subr.bf16.mxu0 0
      %513 = vmatpush1.bf16.msra.mxu0 0
      %514 = vmatprep.subr.bf16.mxu0 0
      %515 = vmatpush1.bf16.msra.mxu0 0
      %516 = vmatprep.subr.bf16.mxu0 0
      %517 = vmatpush1.bf16.msra.mxu0 0
      %518 = vmatprep.subr.bf16.mxu0 0
      %519 = vmatpush1.bf16.msra.mxu0 0
      %520 = vmatprep.subr.bf16.mxu0 0
      %521 = vmatpush1.bf16.msra.mxu0 0
      %522 = vmatprep.subr.bf16.mxu0 0
      %523 = vmatpush1.bf16.msra.mxu0 0
      %524 = vmatprep.subr.bf16.mxu0 0
      %525 = vmatpush1.bf16.msra.mxu0 0
      %526 = vmatprep.subr.bf16.mxu0 0
      %527 = vmatpush1.bf16.msra.mxu0 0
      %528 = vmatprep.subr.bf16.mxu0 0
      %529 = vmatpush1.bf16.msra.mxu0 0
      %530 = vmatprep.subr.bf16.mxu0 0
      %531 = vmatpush1.bf16.msra.mxu0 0
      %532 = vmatprep.subr.bf16.mxu0 0
      %533 = vmatpush1.bf16.msra.mxu0 0
      %534 = vmatprep.subr.bf16.mxu0 0
      %535 = vmatpush1.bf16.msra.mxu0 0
      %536 = vmatprep.subr.bf16.mxu0 0
      %537 = vmatpush1.bf16.msra.mxu0 0
      %538 = vmatprep.subr.bf16.mxu0 0
      %539 = vmatpush1.bf16.msra.mxu0 0
      %540 = vmatprep.subr.bf16.mxu0 0
      %541 = vmatpush1.bf16.msra.mxu0 0
      %542 = vmatprep.mubr.bf16.mxu0 0
      %543 = vmatmul.mubr.bf16.gmra.mrb[0].mxu0 %v508
      %v544 = vpop.f32.mrb[0].mxu0
      %v545 = vadd.f32 0.0, %v544
      %v546 = vpop.f32.mrb[0].mxu0
      %v547 = vpop.f32.mrb[0].mxu0
      %v548 = vadd.f32 0.0, %v547
      %v549 = vpop.f32.mrb[0].mxu0
      %550 = vdwg.mxu0
      %v551 = vmul.f32 %v545, %v389
      %v552 = vmul.f32 %v548, %v394
      %v553 = vadd.f32 %v551, %v401
      %v554 = vadd.f32 %v552, %v406
      %v555 = vmax.f32 %v553, 0.0
      %v556 = vmax.f32 %v554, 0.0
      %557 = vst.msk [vmem:[%s318 + $0x8] sm:$0xff] %vm412, %v555
      %558 = vst.msk [vmem:[%s318 + $0x28] sm:$0xff] %vm412, %v556
      %v559 = vld [vmem:[%s415] sm:$0xf]
      %v560 = vld [vmem:[%s415 + $0x4] sm:$0xf]
      %v561 = vld [vmem:[%s286 + $0x8] sm:$0xf]
      %v562 = vld [vmem:[%s286 + $0xc] sm:$0xf]
      %v565 = vunpack.c.l.b16 %v559
      %v566 = vunpack.c.l.b16 %v560
      %v567 = vpack.c.b16 %v566, %v565
      %v570 = vunpack.c.l.b16 %v561
      %v571 = vunpack.c.l.b16 %v562
      %v572 = vpack.c.b16 %v571, %v570
      %v575 = vsel %vm341, %v567, 0
      %577 = vmatprep.subr.bf16.mxu0 0
      %578 = vmatpush1.bf16.msra.mxu0 %v572
      %579 = vmatprep.subr.bf16.mxu0 0
      %580 = vmatpush1.bf16.msra.mxu0 0
      %581 = vmatprep.subr.bf16.mxu0 0
      %582 = vmatpush1.bf16.msra.mxu0 0
      %583 = vmatprep.subr.bf16.mxu0 0
      %584 = vmatpush1.bf16.msra.mxu0 0
      %585 = vmatprep.subr.bf16.mxu0 0
      %586 = vmatpush1.bf16.msra.mxu0 0
      %587 = vmatprep.subr.bf16.mxu0 0
      %588 = vmatpush1.bf16.msra.mxu0 0
      %589 = vmatprep.subr.bf16.mxu0 0
      %590 = vmatpush1.bf16.msra.mxu0 0
      %591 = vmatprep.subr.bf16.mxu0 0
      %592 = vmatpush1.bf16.msra.mxu0 0
      %593 = vmatprep.subr.bf16.mxu0 0
      %594 = vmatpush1.bf16.msra.mxu0 0
      %595 = vmatprep.subr.bf16.mxu0 0
      %596 = vmatpush1.bf16.msra.mxu0 0
      %597 = vmatprep.subr.bf16.mxu0 0
      %598 = vmatpush1.bf16.msra.mxu0 0
      %599 = vmatprep.subr.bf16.mxu0 0
      %600 = vmatpush1.bf16.msra.mxu0 0
      %601 = vmatprep.subr.bf16.mxu0 0
      %602 = vmatpush1.bf16.msra.mxu0 0
      %603 = vmatprep.subr.bf16.mxu0 0
      %604 = vmatpush1.bf16.msra.mxu0 0
      %605 = vmatprep.subr.bf16.mxu0 0
      %606 = vmatpush1.bf16.msra.mxu0 0
      %607 = vmatprep.subr.bf16.mxu0 0
      %608 = vmatpush1.bf16.msra.mxu0 0
      %609 = vmatprep.mubr.bf16.mxu0 0
      %610 = vmatmul.mubr.bf16.gmra.mrb[0].mxu0 %v575
      %v611 = vpop.f32.mrb[0].mxu0
      %v612 = vadd.f32 0.0, %v611
      %v613 = vpop.f32.mrb[0].mxu0
      %v614 = vpop.f32.mrb[0].mxu0
      %v615 = vadd.f32 0.0, %v614
      %v616 = vpop.f32.mrb[0].mxu0
      %617 = vdwg.mxu0
      %v618 = vmul.f32 %v612, %v389
      %v619 = vmul.f32 %v615, %v394
      %v620 = vadd.f32 %v618, %v401
      %v621 = vadd.f32 %v619, %v406
      %v622 = vmax.f32 %v620, 0.0
      %v623 = vmax.f32 %v621, 0.0
      %626 = vrot.lane.b32.xlu0 %v622, 64
      %v627 = vpop.permute.xlu0 %626
      %628 = vrot.lane.b32.xlu0 %v623, 64
      %v629 = vpop.permute.xlu0 %628
      %632 = vst.msk [vmem:[%s318 + $0x8] sm:$0xff] %vm489, %v627
      %633 = vst.msk [vmem:[%s318 + $0x28] sm:$0xff] %vm489, %v629
      %v634 = vld [vmem:[%s291] sm:$0xf]
      %v635 = vld [vmem:[%s291 + $0x4] sm:$0xf]
      %v636 = vld [vmem:[%s286 + $0x8] sm:$0xf]
      %v637 = vld [vmem:[%s286 + $0xc] sm:$0xf]
      %v640 = vunpack.c.l.b16 %v634
      %v641 = vunpack.c.l.b16 %v635
      %v642 = vpack.c.b16 %v641, %v640
      %v645 = vunpack.c.l.b16 %v636
      %v646 = vunpack.c.l.b16 %v637
      %v647 = vpack.c.b16 %v646, %v645
      %v650 = vsel %vm341, %v642, 0
      %652 = vmatprep.subr.bf16.mxu0 0
      %653 = vmatpush1.bf16.msra.mxu0 %v647
      %654 = vmatprep.subr.bf16.mxu0 0
      %655 = vmatpush1.bf16.msra.mxu0 0
      %656 = vmatprep.subr.bf16.mxu0 0
      %657 = vmatpush1.bf16.msra.mxu0 0
      %658 = vmatprep.subr.bf16.mxu0 0
      %659 = vmatpush1.bf16.msra.mxu0 0
      %660 = vmatprep.subr.bf16.mxu0 0
      %661 = vmatpush1.bf16.msra.mxu0 0
      %662 = vmatprep.subr.bf16.mxu0 0
      %663 = vmatpush1.bf16.msra.mxu0 0
      %664 = vmatprep.subr.bf16.mxu0 0
      %665 = vmatpush1.bf16.msra.mxu0 0
      %666 = vmatprep.subr.bf16.mxu0 0
      %667 = vmatpush1.bf16.msra.mxu0 0
      %668 = vmatprep.subr.bf16.mxu0 0
      %669 = vmatpush1.bf16.msra.mxu0 0
      %670 = vmatprep.subr.bf16.mxu0 0
      %671 = vmatpush1.bf16.msra.mxu0 0
      %672 = vmatprep.subr.bf16.mxu0 0
      %673 = vmatpush1.bf16.msra.mxu0 0
      %674 = vmatprep.subr.bf16.mxu0 0
      %675 = vmatpush1.bf16.msra.mxu0 0
      %676 = vmatprep.subr.bf16.mxu0 0
      %677 = vmatpush1.bf16.msra.mxu0 0
      %678 = vmatprep.subr.bf16.mxu0 0
      %679 = vmatpush1.bf16.msra.mxu0 0
      %680 = vmatprep.subr.bf16.mxu0 0
      %681 = vmatpush1.bf16.msra.mxu0 0
      %682 = vmatprep.subr.bf16.mxu0 0
      %683 = vmatpush1.bf16.msra.mxu0 0
      %684 = vmatprep.mubr.bf16.mxu0 0
      %685 = vmatmul.mubr.bf16.gmra.mrb[0].mxu0 %v650
      %v686 = vpop.f32.mrb[0].mxu0
      %v687 = vadd.f32 0.0, %v686
      %v688 = vpop.f32.mrb[0].mxu0
      %v689 = vpop.f32.mrb[0].mxu0
      %v690 = vadd.f32 0.0, %v689
      %v691 = vpop.f32.mrb[0].mxu0
      %692 = vdwg.mxu0
      %v693 = vmul.f32 %v687, %v389
      %v694 = vmul.f32 %v690, %v394
      %v695 = vadd.f32 %v693, %v401
      %v696 = vadd.f32 %v694, %v406
      %v697 = vmax.f32 %v695, 0.0
      %v698 = vmax.f32 %v696, 0.0
      %699 = vst.msk [vmem:[%s318 + $0x10] sm:$0xff] %vm412, %v697
      %700 = vst.msk [vmem:[%s318 + $0x30] sm:$0xff] %vm412, %v698
      %v701 = vld [vmem:[%s415] sm:$0xf]
      %v702 = vld [vmem:[%s415 + $0x4] sm:$0xf]
      %v703 = vld [vmem:[%s286 + $0xc] sm:$0xf]
      %v704 = vld [vmem:[%s286 + $0x10] sm:$0xf]
      %v707 = vunpack.c.l.b16 %v701
      %v708 = vunpack.c.l.b16 %v702
      %v709 = vpack.c.b16 %v708, %v707
      %v712 = vunpack.c.l.b16 %v703
      %v713 = vunpack.c.l.b16 %v704
      %v714 = vpack.c.b16 %v713, %v712
      %v717 = vsel %vm341, %v709, 0
      %719 = vmatprep.subr.bf16.mxu0 0
      %720 = vmatpush1.bf16.msra.mxu0 %v714
      %721 = vmatprep.subr.bf16.mxu0 0
      %722 = vmatpush1.bf16.msra.mxu0 0
      %723 = vmatprep.subr.bf16.mxu0 0
      %724 = vmatpush1.bf16.msra.mxu0 0
      %725 = vmatprep.subr.bf16.mxu0 0
      %726 = vmatpush1.bf16.msra.mxu0 0
      %727 = vmatprep.subr.bf16.mxu0 0
      %728 = vmatpush1.bf16.msra.mxu0 0
      %729 = vmatprep.subr.bf16.mxu0 0
      %730 = vmatpush1.bf16.msra.mxu0 0
      %731 = vmatprep.subr.bf16.mxu0 0
      %732 = vmatpush1.bf16.msra.mxu0 0
      %733 = vmatprep.subr.bf16.mxu0 0
      %734 = vmatpush1.bf16.msra.mxu0 0
      %735 = vmatprep.subr.bf16.mxu0 0
      %736 = vmatpush1.bf16.msra.mxu0 0
      %737 = vmatprep.subr.bf16.mxu0 0
      %738 = vmatpush1.bf16.msra.mxu0 0
      %739 = vmatprep.subr.bf16.mxu0 0
      %740 = vmatpush1.bf16.msra.mxu0 0
      %741 = vmatprep.subr.bf16.mxu0 0
      %742 = vmatpush1.bf16.msra.mxu0 0
      %743 = vmatprep.subr.bf16.mxu0 0
      %744 = vmatpush1.bf16.msra.mxu0 0
      %745 = vmatprep.subr.bf16.mxu0 0
      %746 = vmatpush1.bf16.msra.mxu0 0
      %747 = vmatprep.subr.bf16.mxu0 0
      %748 = vmatpush1.bf16.msra.mxu0 0
      %749 = vmatprep.subr.bf16.mxu0 0
      %750 = vmatpush1.bf16.msra.mxu0 0
      %751 = vmatprep.mubr.bf16.mxu0 0
      %752 = vmatmul.mubr.bf16.gmra.mrb[0].mxu0 %v717
      %v753 = vpop.f32.mrb[0].mxu0
      %v754 = vadd.f32 0.0, %v753
      %v755 = vpop.f32.mrb[0].mxu0
      %v756 = vpop.f32.mrb[0].mxu0
      %v757 = vadd.f32 0.0, %v756
      %v758 = vpop.f32.mrb[0].mxu0
      %759 = vdwg.mxu0
      %v760 = vmul.f32 %v754, %v389
      %v761 = vmul.f32 %v757, %v394
      %v762 = vadd.f32 %v760, %v401
      %v763 = vadd.f32 %v761, %v406
      %v764 = vmax.f32 %v762, 0.0
      %v765 = vmax.f32 %v763, 0.0
      %768 = vrot.lane.b32.xlu0 %v764, 64
      %v769 = vpop.permute.xlu0 %768
      %770 = vrot.lane.b32.xlu0 %v765, 64
      %v771 = vpop.permute.xlu0 %770
      %774 = vst.msk [vmem:[%s318 + $0x10] sm:$0xff] %vm489, %v769
      %775 = vst.msk [vmem:[%s318 + $0x30] sm:$0xff] %vm489, %v771
      %v776 = vld [vmem:[%s291] sm:$0xf]
      %v777 = vld [vmem:[%s291 + $0x4] sm:$0xf]
      %v778 = vld [vmem:[%s286 + $0xc] sm:$0xf]
      %v779 = vld [vmem:[%s286 + $0x10] sm:$0xf]
      %v782 = vunpack.c.l.b16 %v776
      %v783 = vunpack.c.l.b16 %v777
      %v784 = vpack.c.b16 %v783, %v782
      %v787 = vunpack.c.l.b16 %v778
      %v788 = vunpack.c.l.b16 %v779
      %v789 = vpack.c.b16 %v788, %v787
      %v792 = vsel %vm341, %v784, 0
      %794 = vmatprep.subr.bf16.mxu0 0
      %795 = vmatpush1.bf16.msra.mxu0 %v789
      %796 = vmatprep.subr.bf16.mxu0 0
      %797 = vmatpush1.bf16.msra.mxu0 0
      %798 = vmatprep.subr.bf16.mxu0 0
      %799 = vmatpush1.bf16.msra.mxu0 0
      %800 = vmatprep.subr.bf16.mxu0 0
      %801 = vmatpush1.bf16.msra.mxu0 0
      %802 = vmatprep.subr.bf16.mxu0 0
      %803 = vmatpush1.bf16.msra.mxu0 0
      %804 = vmatprep.subr.bf16.mxu0 0
      %805 = vmatpush1.bf16.msra.mxu0 0
      %806 = vmatprep.subr.bf16.mxu0 0
      %807 = vmatpush1.bf16.msra.mxu0 0
      %808 = vmatprep.subr.bf16.mxu0 0
      %809 = vmatpush1.bf16.msra.mxu0 0
      %810 = vmatprep.subr.bf16.mxu0 0
      %811 = vmatpush1.bf16.msra.mxu0 0
      %812 = vmatprep.subr.bf16.mxu0 0
      %813 = vmatpush1.bf16.msra.mxu0 0
      %814 = vmatprep.subr.bf16.mxu0 0
      %815 = vmatpush1.bf16.msra.mxu0 0
      %816 = vmatprep.subr.bf16.mxu0 0
      %817 = vmatpush1.bf16.msra.mxu0 0
      %818 = vmatprep.subr.bf16.mxu0 0
      %819 = vmatpush1.bf16.msra.mxu0 0
      %820 = vmatprep.subr.bf16.mxu0 0
      %821 = vmatpush1.bf16.msra.mxu0 0
      %822 = vmatprep.subr.bf16.mxu0 0
      %823 = vmatpush1.bf16.msra.mxu0 0
      %824 = vmatprep.subr.bf16.mxu0 0
      %825 = vmatpush1.bf16.msra.mxu0 0
      %826 = vmatprep.mubr.bf16.mxu0 0
      %827 = vmatmul.mubr.bf16.gmra.mrb[0].mxu0 %v792
      %v828 = vpop.f32.mrb[0].mxu0
      %v829 = vadd.f32 0.0, %v828
      %v830 = vpop.f32.mrb[0].mxu0
      %v831 = vpop.f32.mrb[0].mxu0
      %v832 = vadd.f32 0.0, %v831
      %v833 = vpop.f32.mrb[0].mxu0
      %834 = vdwg.mxu0
      %v835 = vmul.f32 %v829, %v389
      %v836 = vmul.f32 %v832, %v394
      %v837 = vadd.f32 %v835, %v401
      %v838 = vadd.f32 %v836, %v406
      %v839 = vmax.f32 %v837, 0.0
      %v840 = vmax.f32 %v838, 0.0
      %841 = vst.msk [vmem:[%s318 + $0x18] sm:$0xff] %vm412, %v839
      %842 = vst.msk [vmem:[%s318 + $0x38] sm:$0xff] %vm412, %v840
      %v843 = vld [vmem:[%s415] sm:$0xf]
      %v844 = vld [vmem:[%s415 + $0x4] sm:$0xf]
      %v845 = vld [vmem:[%s286 + $0x10] sm:$0xf]
      %v846 = vld [vmem:[%s286 + $0x14] sm:$0xf]
      %v849 = vunpack.c.l.b16 %v843
      %v850 = vunpack.c.l.b16 %v844
      %v851 = vpack.c.b16 %v850, %v849
      %v854 = vunpack.c.l.b16 %v845
      %v855 = vunpack.c.l.b16 %v846
      %v856 = vpack.c.b16 %v855, %v854
      %v859 = vsel %vm341, %v851, 0
      %861 = vmatprep.subr.bf16.mxu0 0
      %862 = vmatpush1.bf16.msra.mxu0 %v856
      %863 = vmatprep.subr.bf16.mxu0 0
      %864 = vmatpush1.bf16.msra.mxu0 0
      %865 = vmatprep.subr.bf16.mxu0 0
      %866 = vmatpush1.bf16.msra.mxu0 0
      %867 = vmatprep.subr.bf16.mxu0 0
      %868 = vmatpush1.bf16.msra.mxu0 0
      %869 = vmatprep.subr.bf16.mxu0 0
      %870 = vmatpush1.bf16.msra.mxu0 0
      %871 = vmatprep.subr.bf16.mxu0 0
      %872 = vmatpush1.bf16.msra.mxu0 0
      %873 = vmatprep.subr.bf16.mxu0 0
      %874 = vmatpush1.bf16.msra.mxu0 0
      %875 = vmatprep.subr.bf16.mxu0 0
      %876 = vmatpush1.bf16.msra.mxu0 0
      %877 = vmatprep.subr.bf16.mxu0 0
      %878 = vmatpush1.bf16.msra.mxu0 0
      %879 = vmatprep.subr.bf16.mxu0 0
      %880 = vmatpush1.bf16.msra.mxu0 0
      %881 = vmatprep.subr.bf16.mxu0 0
      %882 = vmatpush1.bf16.msra.mxu0 0
      %883 = vmatprep.subr.bf16.mxu0 0
      %884 = vmatpush1.bf16.msra.mxu0 0
      %885 = vmatprep.subr.bf16.mxu0 0
      %886 = vmatpush1.bf16.msra.mxu0 0
      %887 = vmatprep.subr.bf16.mxu0 0
      %888 = vmatpush1.bf16.msra.mxu0 0
      %889 = vmatprep.subr.bf16.mxu0 0
      %890 = vmatpush1.bf16.msra.mxu0 0
      %891 = vmatprep.subr.bf16.mxu0 0
      %892 = vmatpush1.bf16.msra.mxu0 0
      %893 = vmatprep.mubr.bf16.mxu0 0
      %894 = vmatmul.mubr.bf16.gmra.mrb[0].mxu0 %v859
      %v895 = vpop.f32.mrb[0].mxu0
      %v896 = vadd.f32 0.0, %v895
      %v897 = vpop.f32.mrb[0].mxu0
      %v898 = vpop.f32.mrb[0].mxu0
      %v899 = vadd.f32 0.0, %v898
      %v900 = vpop.f32.mrb[0].mxu0
      %901 = vdwg.mxu0
      %v902 = vmul.f32 %v896, %v389
      %v903 = vmul.f32 %v899, %v394
      %v904 = vadd.f32 %v902, %v401
      %v905 = vadd.f32 %v903, %v406
      %v906 = vmax.f32 %v904, 0.0
      %v907 = vmax.f32 %v905, 0.0
      %910 = vrot.lane.b32.xlu0 %v906, 64
      %v911 = vpop.permute.xlu0 %910
      %912 = vrot.lane.b32.xlu0 %v907, 64
      %v913 = vpop.permute.xlu0 %912
      %916 = vst.msk [vmem:[%s318 + $0x18] sm:$0xff] %vm489, %v911
      %917 = vst.msk [vmem:[%s318 + $0x38] sm:$0xff] %vm489, %v913
      %s918 = smul.u32 2, %s21
      %s919 = smul.u32 4, %s22
      %p920 = scmp.lt.s32.totalorder %s20, 1
      %s921 = scalar_select %p920, %s20, 1
      %p922 = scmp.lt.s32.totalorder %s918, 1
      %s923 = scalar_select %p922, %s918, 1
      %p924 = scmp.lt.s32.totalorder %s919, 3
      %s925 = scalar_select %p924, %s919, 3
      %s926 = smul.addr %s923, 4
      %s927 = sadd.s32 %s925, %s926
      %s928 = smul.addr %s921, 8
      %s929 = sadd.s32 %s927, %s928
      %s930 = smul.addr %s929, 8
      %s931 = scalar_lea.vmem %s4, %s930
      // Predicated region
      $region37: #{a_call__.3} parent=35 // pred_check
        %p932 = pneg %p162
      $region38: #{a_call__.3} parent=35 // pred_check_branch
        %934 = sbr.rel (%p932) target = $region40
      $region39: #{a_call__.3} parent=35 // pred_region
        %s935 = smul.u32 2, %s21
        %s936 = smul.u32 4, %s22
      $region40: #{a_call__.3} parent=35 // pred_fallthru
        _
    $region36: #{a_call__.3} parent=5 // pred_fallthru
      _
    %p937 = scmp.le.s32.totalorder 2, %s10
    // Predicated region
    $region41: #{a_call__.3} parent=5 // pred_check
      %p938 = pneg %p937
    $region42: #{a_call__.3} parent=5 // pred_check_branch
      %940 = sbr.rel (%p938) target = $region44
    $region43: #{a_call__.3} parent=5 // pred_region
      %s941 = ssub.s32 %s10, 2
      // Predicated region
      $region45: #{a_call__.3} parent=43 // pred_check
        %p942 = pneg %p168
      $region46: #{a_call__.3} parent=43 // pred_check_branch
        %944 = sbr.rel (%p942) target = $region48
      $region47: #{a_call__.3} parent=43 // pred_region
        %s945 = smul.u32 2, %s24
        %s946 = smul.u32 4, %s25
        %p947 = scmp.lt.s32.totalorder %s23, 1
        %s948 = scalar_select %p947, %s23, 1
        %p949 = scmp.lt.s32.totalorder %s945, 1
        %s950 = scalar_select %p949, %s945, 1
        %p951 = scmp.lt.s32.totalorder %s946, 3
        %s952 = scalar_select %p951, %s946, 3
        %s953 = smul.addr %s950, 4
        %s954 = sadd.s32 %s952, %s953
        %s955 = smul.addr %s948, 8
        %s956 = sadd.s32 %s954, %s955
        %s957 = smul.addr %s956, 8
        %s958 = scalar_lea.vmem %s4, %s957
      $region48: #{a_call__.3} parent=43 // pred_fallthru
        _
    $region44: #{a_call__.3} parent=5 // pred_fallthru
      _
  $region6: #{a_call__.3} parent=0 // loop_footer
    %s14 = sadd.s32 1, %s10
  $region7: #{a_call__.3} parent=0 // loop_footer_branch
    %9 = sbr.rel target = $region3
  $region8: #{a_call__.3} parent=0 // loop_exit
    _

</llo_original>
